<compile_context>
chip_gen: v6e
topology: v6e:2x2x1
jax: 0.10.0
libtpu: 0.0.40
codegen_flags: <defaults>
</compile_context>

<pallas_src>
import functools

import jax
import jax.numpy as jnp
from jax import lax
from jax.experimental import pallas as pl
from jax.experimental.pallas import tpu as pltpu

MAX_NORM = 3.0
RENORM_EPS = 1e-7          # matches torch.embedding_renorm_
_LANE = 128                # TPU lane width (last-dim tiling unit)
_SUBLANE = 8

_MIN_PALLAS_N = 64         # below this, XLA's fused gather beats pallas_call overhead
_ONEHOT_MAX_VOCAB = 2048   # one-hot MXU gather only for small vocabularies
_RESIDENT_VOCAB_FACTOR = 4 # resident only if V <= factor * N (bytes-moved heuristic)


def _vmem_capacity_bytes():
    """Generation-aware VMEM capacity (per TensorCore)."""
    try:
        cap = getattr(pltpu.get_tpu_info(), "vmem_capacity_bytes", None)
        if cap:
            return int(cap)
    except Exception:
        pass
    return 64 * 1024 * 1024  # conservative fallback = v7x per-TC VMEM


def _resident_table_limit_bytes():
    # The table is kept as a single (non-double-buffered) VMEM scratch copy,
    # so the budget is capacity minus ~16 MiB for output buffers, one-hot
    # temporaries and compiler margin:
    #   v7x (64 MiB)   -> ~48 MiB resident cutoff
    #   v6e/v5e (128)  -> ~112 MiB resident cutoff
    return max(16 << 20, _vmem_capacity_bytes() - (16 << 20))


def _renorm_rows_exact(rows):
    """Exact torch.embedding_renorm_ forward rule (reference / tiny-N path)."""
    rows_f32 = rows.astype(jnp.float32)
    norms = jnp.sqrt(jnp.sum(rows_f32 * rows_f32, axis=-1, keepdims=True))
    scale = jnp.where(norms > MAX_NORM, MAX_NORM / (norms + RENORM_EPS), 1.0)
    return (rows_f32 * scale).astype(rows.dtype)


def _renorm_f32(rows_f32):
    """In-kernel renorm: MAX_NORM * rsqrt(sumsq) on the EUP (only if norm>3)."""
    sq = jnp.sum(rows_f32 * rows_f32, axis=-1, keepdims=True)
    scale = jnp.where(sq > MAX_NORM * MAX_NORM, MAX_NORM * lax.rsqrt(sq), 1.0)
    return rows_f32 * scale


# ---------------------------------------------------------------------------
# Resident paths: table DMA'd once into a persistent VMEM scratch at step 0.
# ---------------------------------------------------------------------------
def _resident_gather_kernel(idx_ref, table_hbm, out_ref, table_vmem, load_sem,
                            *, chunk):
    # idx_ref    : SMEM int32[n_pad]          (scalar prefetch)
    # table_hbm  : HBM  [V, D_pad]            (memory_space=pl.ANY)
    # out_ref    : VMEM [chunk, D_pad]
    # table_vmem : VMEM [V, D_pad] scratch    (persists across grid steps)
    step = pl.program_id(0)

    @pl.when(step == 0)
    def _load_table():
        cp = pltpu.make_async_copy(table_hbm, table_vmem, load_sem.at[0])
        cp.start()
        cp.wait()

    base = step * chunk

    def gather_row(g, carry):
        row_id = idx_ref[base + g]
        out_ref[pl.ds(g, 1), :] = table_vmem[pl.ds(row_id, 1), :]
        return carry

    lax.fori_loop(0, chunk, gather_row, 0, unroll=8)

    rows = out_ref[...].astype(jnp.float32)
    out_ref[...] = _renorm_f32(rows).astype(out_ref.dtype)


def _resident_onehot_kernel(idx_ref, table_hbm, out_ref, table_vmem, load_sem,
                            *, vocab):
    # idx_ref    : VMEM int32[chunk, 1]       (per-step block of indices)
    # table_hbm  : HBM  [V, D_pad]            (memory_space=pl.ANY)
    # out_ref    : VMEM [chunk, D_pad]
    # table_vmem : VMEM [V, D_pad] scratch
    @pl.when(pl.program_id(0) == 0)
    def _load_table():
        cp = pltpu.make_async_copy(table_hbm, table_vmem, load_sem.at[0])
        cp.start()
        cp.wait()

    ids = idx_ref[...]                                          # (chunk, 1)
    cols = lax.broadcasted_iota(jnp.int32, (ids.shape[0], vocab), 1)
    one_hot = (cols == ids).astype(table_vmem.dtype)            # (chunk, V)
    rows = jnp.dot(one_hot, table_vmem[...],
                   preferred_element_type=jnp.float32)          # MXU gather
    out_ref[...] = _renorm_f32(rows).astype(out_ref.dtype)


def _gather_renorm_resident(idx_flat, table, *, chunk, use_onehot):
    n = idx_flat.shape[0]
    v, d = table.shape
    d_pad = pl.cdiv(d, _LANE) * _LANE
    if d_pad != d:  # lane-dense layout; zero padding does not change row norms
        table = jnp.pad(table, ((0, 0), (0, d_pad - d)))
    n_pad = pl.cdiv(n, chunk) * chunk
    if n_pad != n:
        idx_flat = jnp.pad(idx_flat, (0, n_pad - n))  # pad with valid index 0

    itemsize = jnp.dtype(table.dtype).itemsize
    table_bytes = v * d_pad * itemsize
    vmem_limit = int(table_bytes                       # single resident copy
                     + 4 * chunk * d_pad * itemsize    # out double-buffer + slack
                     + 4 * chunk * max(v, _LANE)       # one-hot temporaries
                     + (8 << 20))                      # margin
    vmem_limit = min(vmem_limit, _vmem_capacity_bytes())

    scratch = [pltpu.VMEM((v, d_pad), table.dtype),
               pltpu.SemaphoreType.DMA((1,))]
    compiler_params = pltpu.CompilerParams(
        # Sequential grid on one TensorCore: the table scratch is loaded once
        # at step 0 and reused every step (megacore "parallel" would duplicate
        # the full-table HBM fetch and per-TC VMEM for little gain here).
        dimension_semantics=("arbitrary",),
        vmem_limit_bytes=vmem_limit,
    )

    if use_onehot:
        out = pl.pallas_call(
            functools.partial(_resident_onehot_kernel, vocab=v),
            out_shape=jax.ShapeDtypeStruct((n_pad, d_pad), table.dtype),
            grid_spec=pltpu.PrefetchScalarGridSpec(
                num_scalar_prefetch=0,
                grid=(n_pad // chunk,),
                in_specs=[
                    pl.BlockSpec((chunk, 1), lambda i: (i, 0)),
                    pl.BlockSpec(memory_space=pl.ANY),
                ],
                out_specs=pl.BlockSpec((chunk, d_pad), lambda i: (i, 0)),
                scratch_shapes=scratch,
            ),
            compiler_params=compiler_params,
        )(idx_flat.reshape(n_pad, 1), table)
    else:
        out = pl.pallas_call(
            functools.partial(_resident_gather_kernel, chunk=chunk),
            out_shape=jax.ShapeDtypeStruct((n_pad, d_pad), table.dtype),
            grid_spec=pltpu.PrefetchScalarGridSpec(
                num_scalar_prefetch=1,
                grid=(n_pad // chunk,),
                in_specs=[pl.BlockSpec(memory_space=pl.ANY)],
                out_specs=pl.BlockSpec((chunk, d_pad), lambda i, idx: (i, 0)),
                scratch_shapes=scratch,
            ),
            compiler_params=compiler_params,
        )(idx_flat, table)
    return out[:n, :d]


# ---------------------------------------------------------------------------
# Streaming path: chunked, manually double-buffered per-row DMA gather
# (table stays in HBM; only N rows are fetched).
# ---------------------------------------------------------------------------
def _streaming_gather_kernel(idx_ref, table_hbm, out_ref, stage_ref, sem,
                             *, chunk):
    # idx_ref   : SMEM int32[n_pad]      (scalar prefetch)
    # table_hbm : HBM  [V, D_pad]        (memory_space=pl.ANY)
    # out_ref   : VMEM [chunk, D_pad]
    # stage_ref : VMEM [2, chunk, D_pad] (double buffer, persists across steps)
    # sem       : DMA sems, shape (2,)
    step = pl.program_id(0)
    nsteps = pl.num_programs(0)
    slot = lax.rem(step, 2)

    def issue_chunk(chunk_idx, to_slot):
        base = chunk_idx * chunk

        def issue(g, carry):
            row_id = idx_ref[base + g]
            pltpu.make_async_copy(table_hbm.at[row_id],
                                  stage_ref.at[to_slot, g],
                                  sem.at[to_slot]).start()
            return carry

        lax.fori_loop(0, chunk, issue, 0, unroll=8)

    @pl.when(step == 0)
    def _prologue():                 # prime slot 0 with the first chunk
        issue_chunk(0, 0)

    @pl.when(step + 1 < nsteps)
    def _prefetch_next():            # overlap next chunk's fetches with compute
        issue_chunk(step + 1, 1 - slot)

    # Wait for the `chunk` row copies of the current chunk (all same size).
    wait_cp = pltpu.make_async_copy(table_hbm.at[0], stage_ref.at[0, 0],
                                    sem.at[slot])

    def drain(g, carry):
        wait_cp.wait()
        return carry

    lax.fori_loop(0, chunk, drain, 0, unroll=8)

    rows = stage_ref[slot].astype(jnp.float32)
    out_ref[...] = _renorm_f32(rows).astype(out_ref.dtype)


def _gather_renorm_streaming(idx_flat, table, *, chunk):
    n = idx_flat.shape[0]
    v, d = table.shape
    d_pad = pl.cdiv(d, _LANE) * _LANE
    if d_pad != d:
        table = jnp.pad(table, ((0, 0), (0, d_pad - d)))
    n_pad = pl.cdiv(n, chunk) * chunk
    if n_pad != n:
        idx_flat = jnp.pad(idx_flat, (0, n_pad - n))

    out = pl.pallas_call(
        functools.partial(_streaming_gather_kernel, chunk=chunk),
        out_shape=jax.ShapeDtypeStruct((n_pad, d_pad), table.dtype),
        grid_spec=pltpu.PrefetchScalarGridSpec(
            num_scalar_prefetch=1,
            grid=(n_pad // chunk,),
            in_specs=[pl.BlockSpec(memory_space=pl.ANY)],
            out_specs=pl.BlockSpec((chunk, d_pad), lambda i, idx: (i, 0)),
            scratch_shapes=[
                pltpu.VMEM((2, chunk, d_pad), table.dtype),
                pltpu.SemaphoreType.DMA((2,)),
            ],
        ),
        compiler_params=pltpu.CompilerParams(
            # Manual cross-step double-buffering carries in-flight DMAs across
            # grid steps -> must stay sequential on one core.
            dimension_semantics=("arbitrary",),
        ),
    )(idx_flat, table)
    return out[:n, :d]


# ---------------------------------------------------------------------------
# Public wrapper (OntologicalEncoder.forward)
# ---------------------------------------------------------------------------
def ontological_encoder(nouns_idx, conceptnet_embeddings, *, chunk=256,
                        force_path=None):
    """Embedding lookup with max_norm=3.0 (frozen table), Hs = E[nouns_idx]."""
    idx_flat = nouns_idx.reshape(-1).astype(jnp.int32)
    n = int(idx_flat.shape[0])
    v, d = conceptnet_embeddings.shape
    # PyTorch raises on out-of-range indices; a traced TPU kernel cannot, so
    # clamp instead.  TODO(synk): optional host-side bounds assertion.
    idx_flat = jnp.clip(idx_flat, 0, v - 1)

    d_pad = pl.cdiv(d, _LANE) * _LANE
    itemsize = jnp.dtype(conceptnet_embeddings.dtype).itemsize
    table_bytes = v * d_pad * itemsize

    # chunk: multiple of 8 and not (much) larger than N.
    chunk = min(chunk, pl.cdiv(max(n, 1), _SUBLANE) * _SUBLANE)
    chunk = max(_SUBLANE, (chunk // _SUBLANE) * _SUBLANE)

    if force_path is not None:
        path = force_path
    elif n < _MIN_PALLAS_N:
        path = "jax"
    elif (table_bytes <= _resident_table_limit_bytes()
          and v <= _RESIDENT_VOCAB_FACTOR * n):
        # Resident path reads the whole V x D table from HBM once; pick it only
        # when that is comparable to the N x D bytes the gather actually needs.
        path = "resident_onehot" if v <= _ONEHOT_MAX_VOCAB else "resident"
    else:
        path = "streaming"

    if path == "jax":
        out = _renorm_rows_exact(conceptnet_embeddings[idx_flat])
    elif path == "resident_onehot":
        out = _gather_renorm_resident(idx_flat, conceptnet_embeddings,
                                      chunk=chunk, use_onehot=True)
    elif path == "resident":
        out = _gather_renorm_resident(idx_flat, conceptnet_embeddings,
                                      chunk=chunk, use_onehot=False)
    elif path == "streaming":
        out = _gather_renorm_streaming(idx_flat, conceptnet_embeddings,
                                       chunk=chunk)
    else:
        raise ValueError(f"unknown path: {path}")
    return out.reshape(nouns_idx.shape + (d,))


def _reference(nouns_idx, table):
    """Pure-JAX reference of PyTorch Embedding(max_norm=3.0) lookup."""
    return _renorm_rows_exact(table[nouns_idx])


if __name__ == "__main__":
    key = jax.random.PRNGKey(0)
    k_tab, k_idx = jax.random.split(key)

    VOCAB, DIM = 512, 128      # ConceptNet-like table (256 KiB -> VMEM resident)
    BATCH, SEQ = 4, 96         # N = 384 noun indices -> exercises the Pallas paths

    # Scaled so that a fraction of rows exceed norm 3.0 and exercise renorm.
    conceptnet_embeddings = (
        jax.random.normal(k_tab, (VOCAB, DIM), jnp.float32) * 0.6)
    nouns_idx = jax.random.randint(k_idx, (BATCH, SEQ), 0, VOCAB, jnp.int32)

    ref = _reference(nouns_idx, conceptnet_embeddings)

    # 1) Default path: small vocab -> VMEM-resident table + one-hot MXU gather.
    hs = jax.block_until_ready(
        ontological_encoder(nouns_idx, conceptnet_embeddings))
    assert hs.shape == (BATCH, SEQ, DIM), hs.shape
    assert jnp.allclose(hs, ref, atol=1e-5, rtol=1e-5), "onehot path mismatch"

    # 2) Resident dynamic-slice gather (used for resident tables with large V).
    hs_r = jax.block_until_ready(
        ontological_encoder(nouns_idx, conceptnet_embeddings,
                            force_path="resident"))
    assert jnp.allclose(hs_r, ref, atol=1e-5, rtol=1e-5), "resident mismatch"

    # 3) Streaming chunked double-buffered DMA gather (tables too large for
    #    VMEM or N << V); force it here with chunk=128 -> 3 grid steps.
    hs_s = jax.block_until_ready(
        ontological_encoder(nouns_idx, conceptnet_embeddings,
                            chunk=128, force_path="streaming"))
    assert jnp.allclose(hs_s, ref, atol=1e-5, rtol=1e-5), "streaming mismatch"

    # 4) Tiny-N fast path (pure JAX; pallas_call overhead would dominate).
    small_idx = nouns_idx[:2, :8]
    hs_t = jax.block_until_ready(
        ontological_encoder(small_idx, conceptnet_embeddings))
    assert jnp.allclose(hs_t, _reference(small_idx, conceptnet_embeddings),
                        atol=1e-5, rtol=1e-5), "fast path mismatch"

    print("KERNEL_OK")
</pallas_src>

<mosaic_0001>
module attributes {stable_mosaic.version = 11 : i64} {
  func.func @_resident_onehot_kernel(%arg0: i32, %arg1: memref<256x1xi32, #tpu.memory_space<vmem>>, %arg2: memref<512x128xf32, #tpu.memory_space<any>>, %arg3: memref<256x128xf32, #tpu.memory_space<vmem>>, %arg4: memref<512x128xf32, #tpu.memory_space<vmem>>, %arg5: memref<1x!tpu.dma_semaphore, #tpu.memory_space<semaphore_mem>>) attributes {dimension_semantics = [#tpu.dimension_semantics<arbitrary>], iteration_bounds = array<i64: 2>, scalar_prefetch = 0 : i64, scratch_operands = 2 : i64, tpu.core_type = #tpu.core_type<tc>, window_params = [{transform_indices = @transform_0, window_bounds = array<i64: 256, 1>}, {}, {transform_indices = @transform_2, window_bounds = array<i64: 256, 128>}]} {
    %c0_i32 = arith.constant 0 : i32
    %0 = arith.cmpi eq, %arg0, %c0_i32 : i32
    %1 = arith.extui %0 : i1 to i32
    %c0_i32_0 = arith.constant 0 : i32
    %2 = arith.cmpi ne, %1, %c0_i32_0 : i32
    scf.if %2 {
      %c0_i32_10 = arith.constant 0 : i32
      %24 = tpu.memref_slice %arg5[%c0_i32_10] : memref<1x!tpu.dma_semaphore, #tpu.memory_space<semaphore_mem>> -> memref<1x!tpu.dma_semaphore, #tpu.memory_space<semaphore_mem>>
      %25 = tpu.memref_squeeze %24 : memref<1x!tpu.dma_semaphore, #tpu.memory_space<semaphore_mem>> -> memref<!tpu.dma_semaphore, #tpu.memory_space<semaphore_mem>>
      tpu.enqueue_dma source(%arg2 : memref<512x128xf32, #tpu.memory_space<any>>) target(%arg4 : memref<512x128xf32, #tpu.memory_space<vmem>>) target_semaphore(%25 : memref<!tpu.dma_semaphore, #tpu.memory_space<semaphore_mem>>)
      %c0_i32_11 = arith.constant 0 : i32
      %26 = tpu.memref_slice %arg5[%c0_i32_11] : memref<1x!tpu.dma_semaphore, #tpu.memory_space<semaphore_mem>> -> memref<1x!tpu.dma_semaphore, #tpu.memory_space<semaphore_mem>>
      %27 = tpu.memref_squeeze %26 : memref<1x!tpu.dma_semaphore, #tpu.memory_space<semaphore_mem>> -> memref<!tpu.dma_semaphore, #tpu.memory_space<semaphore_mem>>
      tpu.wait_dma2 semaphore(%27 : memref<!tpu.dma_semaphore, #tpu.memory_space<semaphore_mem>>) src(%arg2 : memref<512x128xf32, #tpu.memory_space<any>>) dst(%arg4 : memref<512x128xf32, #tpu.memory_space<vmem>>)
    } else {
    }
    %c0 = arith.constant 0 : index
    %c0_1 = arith.constant 0 : index
    %3 = vector.load %arg1[%c0, %c0_1] : memref<256x1xi32, #tpu.memory_space<vmem>>, vector<256x1xi32>
    %4 = tpu.iota {dimensions = array<i32: 1>} : vector<256x512xi32>
    %5 = vector.broadcast %3 : vector<256x1xi32> to vector<256x512xi32>
    %6 = arith.cmpi eq, %4, %5 : vector<256x512xi32>
    %7 = arith.extui %6 : vector<256x512xi1> to vector<256x512xi32>
    %8 = arith.sitofp %7 : vector<256x512xi32> to vector<256x512xf32>
    %c0_2 = arith.constant 0 : index
    %c0_3 = arith.constant 0 : index
    %9 = vector.load %arg4[%c0_2, %c0_3] : memref<512x128xf32, #tpu.memory_space<vmem>>, vector<512x128xf32>
    %cst = arith.constant dense<0.000000e+00> : vector<256x128xf32>
    %10 = tpu.matmul %8, %9, %cst {dimension_numbers = #tpu.dot_dimension_numbers<[1], [0], [0], [1], [0, 0, 1, 1], [], []>} : vector<256x512xf32>, vector<512x128xf32>, vector<256x128xf32> -> vector<256x128xf32>
    %11 = arith.mulf %10, %10 : vector<256x128xf32>
    %cst_4 = arith.constant dense<0.000000e+00> : vector<256xf32>
    %12 = vector.multi_reduction <add>, %11, %cst_4 [1] : vector<256x128xf32> to vector<256xf32>
    %13 = vector.shape_cast %12 : vector<256xf32> to vector<256x1xf32>
    %cst_5 = arith.constant 9.000000e+00 : f32
    %14 = vector.broadcast %cst_5 : f32 to vector<256x1xf32>
    %15 = arith.cmpf ogt, %13, %14 : vector<256x1xf32>
    %16 = math.rsqrt %13 : vector<256x1xf32>
    %cst_6 = arith.constant 3.000000e+00 : f32
    %17 = vector.broadcast %cst_6 : f32 to vector<256x1xf32>
    %18 = arith.mulf %17, %16 : vector<256x1xf32>
    %cst_7 = arith.constant 1.000000e+00 : f32
    %19 = vector.broadcast %cst_7 : f32 to vector<256x1xf32>
    %20 = arith.select %15, %18, %19 : vector<256x1xi1>, vector<256x1xf32>
    %21 = vector.broadcast %20 : vector<256x1xf32> to vector<256x128xf32>
    %22 = arith.mulf %10, %21 : vector<256x128xf32>
    %c0_8 = arith.constant 0 : index
    %c0_9 = arith.constant 0 : index
    %23 = vector.load %arg3[%c0_8, %c0_9] : memref<256x128xf32, #tpu.memory_space<vmem>>, vector<256x128xf32>
    tpu.vector_store %arg3[%c0_8, %c0_9], %22 {strides = array<i32>} : memref<256x128xf32, #tpu.memory_space<vmem>>, vector<256x128xf32>,
    return
  }
  func.func @transform_0(%arg0: i32) -> (i32, i32) {
    %c0_i32 = arith.constant 0 : i32
    %c0_i32_0 = arith.constant 0 : i32
    return %arg0, %c0_i32 : i32, i32
  }
  func.func @transform_2(%arg0: i32) -> (i32, i32) {
    %c0_i32 = arith.constant 0 : i32
    %c0_i32_0 = arith.constant 0 : i32
    return %arg0, %c0_i32 : i32, i32
  }
}

</mosaic_0001>

<llo_original>
// kernel: tpu_custom_call.1
$region0: #{tpu_custom_call.1}
  #allocation0 [shape = 'u32[]', space=smem, size = 0x4, offset = 0x4, fixed_abs, tag = 'smem constant byte address 0x4 - core index']
  #allocation1 [shape = 'u32[144,128]{1,0:T(1,128)}', space=vmem, size = 0x12000, scoped, tag = 'internal scratch']
  #allocation2 [shape = 'f32[512,128]{1,0:T(8,128)}', space=vmem, size = 0x40000, scoped, tag = 'scratch operand']
  #allocation3 [shape = 's32[1]{0}', space=sflag, size = 0x4, scoped, tag = 'scratch operand']
  #allocation6 [shape = 's32[]', space=sflag, size = 0x4, offset = 0, fixed_abs, tag = 'sflag constant byte address 0x0 - dummy sync flag']
  %s0 = inlined_call_operand.vmem [shape: s32[512,1], index: 0, kind: input, shape index: {}]
  %s1 = inlined_call_operand.vmem [shape: f32[512,128], index: 1, kind: input, shape index: {}]
  %s2 = inlined_call_operand.hbm [shape: f32[512,128], index: 2, kind: output, shape index: {}]
  %s3 = sld [smem:[#allocation0]]
  $region75: #{tpu_custom_call.1} parent=0
    _
  %s5 = ssub.s32 1, %s3
  %s6 = scalar_select 0, %s5, %s3
  $region1: #{tpu_custom_call.1} parent=0
    #allocation4 [shape = 'u8[262144]{0}', space=vmem, size = 0x40000, scoped, tag = 'output window, operand 0']
    #allocation5 [shape = 's32[2]{0}', space=sflag, size = 0x8, scoped, tag = 'scoped memory for tpu_custom_call.1']
    %7 = vsyncpa [#allocation5], 0
    %s8 = scalar_lea.sflag [#allocation5], 1
    %9 = vsyncpa %s8, 0
    loop: start=0, step=1, limit=4
    $region2: #{tpu_custom_call.1} parent=1 // loop_pre_header
      _
    $region3: #{tpu_custom_call.1} parent=1 // loop_header
      %s11 = sphi 0, %s15
      %p12 = scmp.ge.s32.totalorder %s11, 4
      %s21 = sphi 0, %s23
      %s24 = sphi 0, %s21
      %s25 = sphi 0, %s24
      %s41 = sphi 0, %s25
      %s47 = sphi 0, %s49
      %s50 = sphi 0, %s47
      %s51 = sphi 0, %s50
      %s67 = sphi 0, %s51
    $region4: #{tpu_custom_call.1} parent=1 // loop_header_branch
      %14 = sbr.rel (%p12) target = $region8
    $region5: #{tpu_custom_call.1} parent=1 // loop_body
      %s16 = ssub.s32 %s11, 1
      %s17 = ssub.s32 %s11, 2
      %s18 = sadd.s32 %s11, 1
      %s19 = ssub.s32 %s11, %s18
      %p20 = scmp.eq.s32.totalorder %s19, 0
      %s22 = sadd.s32 %s21, 1
      %s23 = scalar_select %p20, %s21, %s22
      %p26 = pneg %p20
      %p27 = scmp.eq.s32.totalorder %s11, 1
      %p28 = por %p26, %p27
      %p29 = scmp.ne.s32.totalorder %s21, %s24
      %p30 = scmp.eq.s32.totalorder %s11, 0
      %p31 = por %p29, %p30
      %p32 = scmp.ne.s32.totalorder %s21, %s24
      %p33 = scmp.eq.s32.totalorder %s16, 1
      %p34 = por %p32, %p33
      %p35 = scmp.ne.s32.totalorder %s24, %s25
      %p36 = scmp.eq.s32.totalorder %s16, 0
      %p37 = por %p35, %p36
      %p38 = scmp.ne.s32.totalorder %s24, %s25
      %p39 = scmp.eq.s32.totalorder %s17, 1
      %p40 = por %p38, %p39
      %p42 = scmp.ne.s32.totalorder %s25, %s41
      %p43 = scmp.eq.s32.totalorder %s17, 0
      %p44 = por %p42, %p43
      %s45 = ssub.s32 %s11, %s18
      %p46 = scmp.eq.s32.totalorder %s45, 0
      %s48 = sadd.s32 %s47, 1
      %s49 = scalar_select %p46, %s47, %s48
      %p52 = pneg %p46
      %p53 = scmp.eq.s32.totalorder %s11, 1
      %p54 = por %p52, %p53
      %p55 = scmp.ne.s32.totalorder %s47, %s50
      %p56 = scmp.eq.s32.totalorder %s11, 0
      %p57 = por %p55, %p56
      %p58 = scmp.ne.s32.totalorder %s47, %s50
      %p59 = scmp.eq.s32.totalorder %s16, 1
      %p60 = por %p58, %p59
      %p61 = scmp.ne.s32.totalorder %s50, %s51
      %p62 = scmp.eq.s32.totalorder %s16, 0
      %p63 = por %p61, %p62
      %p64 = scmp.ne.s32.totalorder %s50, %s51
      %p65 = scmp.eq.s32.totalorder %s17, 1
      %p66 = por %p64, %p65
      %p68 = scmp.ne.s32.totalorder %s51, %s67
      %p69 = scmp.eq.s32.totalorder %s17, 0
      %p70 = por %p68, %p69
      %p71 = scmp.le.s32.totalorder 1, %s11
      %p72 = scmp.lt.s32.totalorder %s11, 3
      %p73 = pnand %p71, %p72
      %p74 = pneg %p73
      // Predicated region
      $region9: #{tpu_custom_call.1} parent=5 // pred_check
        _
      $region10: #{tpu_custom_call.1} parent=5 // pred_check_branch
        %76 = sbr.rel (%p73) target = $region12
      $region11: #{tpu_custom_call.1} parent=5 // pred_region
        %s77 = ssub.s32 %s11, 1
      $region12: #{tpu_custom_call.1} parent=5 // pred_fallthru
        _
      %p78 = scmp.lt.s32.totalorder %s11, 2
      // Predicated region
      $region13: #{tpu_custom_call.1} parent=5 // pred_check
        %p79 = pneg %p78
      $region14: #{tpu_custom_call.1} parent=5 // pred_check_branch
        %81 = sbr.rel (%p79) target = $region16
      $region15: #{tpu_custom_call.1} parent=5 // pred_region
        // Predicated region
        $region17: #{tpu_custom_call.1} parent=15 // pred_check
          %p82 = pneg %p31
        $region18: #{tpu_custom_call.1} parent=15 // pred_check_branch
          %84 = sbr.rel (%p82) target = $region20
        $region19: #{tpu_custom_call.1} parent=15 // pred_region
          %s85 = smul.u32 32, %s11
          %p86 = scmp.lt.s32.totalorder %s85, 63
          %s87 = scalar_select %p86, %s85, 63
          %s88 = smul.addr %s87, 8
          %s89 = scalar_lea.vmem %s0, %s88
          %s90 = smul.u32 32, %s11
        $region20: #{tpu_custom_call.1} parent=15 // pred_fallthru
          _
      $region16: #{tpu_custom_call.1} parent=5 // pred_fallthru
        _
      %p91 = scmp.le.s32.totalorder 1, %s11
      %p92 = scmp.lt.s32.totalorder %s11, 3
      %p93 = pnand %p91, %p92
      %p94 = pneg %p93
      // Predicated region
      $region21: #{tpu_custom_call.1} parent=5 // pred_check
        _
      $region22: #{tpu_custom_call.1} parent=5 // pred_check_branch
        %96 = sbr.rel (%p93) target = $region24
      $region23: #{tpu_custom_call.1} parent=5 // pred_region
        %s97 = ssub.s32 %s11, 1
        %s98 = smul.u32 32, %s16
        %p99 = scmp.lt.s32.totalorder %s98, 63
        %s100 = scalar_select %p99, %s98, 63
        %s101 = smul.addr %s100, 8
        %s102 = scalar_lea.vmem %s0, %s101
        %p103 = pneg %p37
        %p104 = pneg %p34
        %p105 = pneg %p63
        %p106 = pneg %p60
        %s107 = sand.u32 %s50, 1
        %s108 = scalar_lea.sflag [#allocation5], %s107
        %s109 = sand.u32 %s50, 1
        %s110 = smul.addr %s109, 256
        %s111 = scalar_lea.vmem [#allocation4], %s110
        %s112 = smul.u32 32, %s16
        %p113 = scmp.lt.s32.totalorder %s112, 63
        %s114 = scalar_select %p113, %s112, 63
        %s115 = smul.addr %s114, 8
        %s116 = scalar_lea.vmem %s0, %s115
        %s117 = smul.u32 32, %s16
        %s118 = smul.u32 32, %s16
        %p119 = scmp.eq.s32.totalorder %s16, 0
        // Predicated region
        $region25: #{tpu_custom_call.1} parent=23 // pred_check
          %p120 = pneg %p119
        $region26: #{tpu_custom_call.1} parent=23 // pred_check_branch
          %122 = sbr.rel (%p120) target = $region28
        $region27: #{tpu_custom_call.1} parent=23 // pred_region
          %p124 = scmp.lt.u32.totalorder 512, 8
          %p125 = pneg %p124
          // Predicated region
          $region29: #{tpu_custom_call.1} parent=27 // pred_check
            _
          $region30: #{tpu_custom_call.1} parent=27 // pred_check_branch
            %127 = sbr.rel (%p124) target = $region32
          $region31: #{tpu_custom_call.1} parent=27 // pred_region
            %s143 = sand.u32 512, 7
            %p144 = scmp.eq.s32.totalorder %s143, 0
            // Predicated region
            $region44: #{tpu_custom_call.1} parent=31 // pred_check
              %p145 = pneg %p144
            $region45: #{tpu_custom_call.1} parent=31 // pred_check_branch
              %147 = sbr.rel (%p145) target = $region47
            $region46: #{tpu_custom_call.1} parent=31 // pred_region
              loop: start=0, step=1, limit=1
              $region48: #{tpu_custom_call.1} parent=46 // loop_pre_header
                _
              $region49: #{tpu_custom_call.1} parent=46 // loop_header
                %s149 = sphi 0, %s153
                %p150 = scmp.ge.s32.totalorder %s149, 1
                %s154 = sphi %s1, %s1
                %s155 = sphi [#allocation2], [#allocation2]
              $region50: #{tpu_custom_call.1} parent=46 // loop_header_branch
                %152 = sbr.rel (%p150) target = $region54
              $region51: #{tpu_custom_call.1} parent=46 // loop_body
                %v156 = vld [vmem:[%s154] sm:$0xff]
                %157 = vst [vmem:[%s155] sm:$0xff] %v156
                %v158 = vld [vmem:[%s154 + $0x8] sm:$0xff]
                %159 = vst [vmem:[%s155 + $0x8] sm:$0xff] %v158
                %v160 = vld [vmem:[%s154 + $0x10] sm:$0xff]
                %161 = vst [vmem:[%s155 + $0x10] sm:$0xff] %v160
                %v162 = vld [vmem:[%s154 + $0x18] sm:$0xff]
                %163 = vst [vmem:[%s155 + $0x18] sm:$0xff] %v162
                %v164 = vld [vmem:[%s154 + $0x20] sm:$0xff]
                %165 = vst [vmem:[%s155 + $0x20] sm:$0xff] %v164
                %v166 = vld [vmem:[%s154 + $0x28] sm:$0xff]
                %167 = vst [vmem:[%s155 + $0x28] sm:$0xff] %v166
                %v168 = vld [vmem:[%s154 + $0x30] sm:$0xff]
                %169 = vst [vmem:[%s155 + $0x30] sm:$0xff] %v168
                %v170 = vld [vmem:[%s154 + $0x38] sm:$0xff]
                %171 = vst [vmem:[%s155 + $0x38] sm:$0xff] %v170
                %v172 = vld [vmem:[%s154 + $0x40] sm:$0xff]
                %173 = vst [vmem:[%s155 + $0x40] sm:$0xff] %v172
                %v174 = vld [vmem:[%s154 + $0x48] sm:$0xff]
                %175 = vst [vmem:[%s155 + $0x48] sm:$0xff] %v174
                %v176 = vld [vmem:[%s154 + $0x50] sm:$0xff]
                %177 = vst [vmem:[%s155 + $0x50] sm:$0xff] %v176
                %v178 = vld [vmem:[%s154 + $0x58] sm:$0xff]
                %179 = vst [vmem:[%s155 + $0x58] sm:$0xff] %v178
                %v180 = vld [vmem:[%s154 + $0x60] sm:$0xff]
                %181 = vst [vmem:[%s155 + $0x60] sm:$0xff] %v180
                %v182 = vld [vmem:[%s154 + $0x68] sm:$0xff]
                %183 = vst [vmem:[%s155 + $0x68] sm:$0xff] %v182
                %v184 = vld [vmem:[%s154 + $0x70] sm:$0xff]
                %185 = vst [vmem:[%s155 + $0x70] sm:$0xff] %v184
                %v186 = vld [vmem:[%s154 + $0x78] sm:$0xff]
                %187 = vst [vmem:[%s155 + $0x78] sm:$0xff] %v186
                %v188 = vld [vmem:[%s154 + $0x80] sm:$0xff]
                %189 = vst [vmem:[%s155 + $0x80] sm:$0xff] %v188
                %v190 = vld [vmem:[%s154 + $0x88] sm:$0xff]
                %191 = vst [vmem:[%s155 + $0x88] sm:$0xff] %v190
                %v192 = vld [vmem:[%s154 + $0x90] sm:$0xff]
                %193 = vst [vmem:[%s155 + $0x90] sm:$0xff] %v192
                %v194 = vld [vmem:[%s154 + $0x98] sm:$0xff]
                %195 = vst [vmem:[%s155 + $0x98] sm:$0xff] %v194
                %v196 = vld [vmem:[%s154 + $0xa0] sm:$0xff]
                %197 = vst [vmem:[%s155 + $0xa0] sm:$0xff] %v196
                %v198 = vld [vmem:[%s154 + $0xa8] sm:$0xff]
                %199 = vst [vmem:[%s155 + $0xa8] sm:$0xff] %v198
                %v200 = vld [vmem:[%s154 + $0xb0] sm:$0xff]
                %201 = vst [vmem:[%s155 + $0xb0] sm:$0xff] %v200
                %v202 = vld [vmem:[%s154 + $0xb8] sm:$0xff]
                %203 = vst [vmem:[%s155 + $0xb8] sm:$0xff] %v202
                %v204 = vld [vmem:[%s154 + $0xc0] sm:$0xff]
                %205 = vst [vmem:[%s155 + $0xc0] sm:$0xff] %v204
                %v206 = vld [vmem:[%s154 + $0xc8] sm:$0xff]
                %207 = vst [vmem:[%s155 + $0xc8] sm:$0xff] %v206
                %v208 = vld [vmem:[%s154 + $0xd0] sm:$0xff]
                %209 = vst [vmem:[%s155 + $0xd0] sm:$0xff] %v208
                %v210 = vld [vmem:[%s154 + $0xd8] sm:$0xff]
                %211 = vst [vmem:[%s155 + $0xd8] sm:$0xff] %v210
                %v212 = vld [vmem:[%s154 + $0xe0] sm:$0xff]
                %213 = vst [vmem:[%s155 + $0xe0] sm:$0xff] %v212
                %v214 = vld [vmem:[%s154 + $0xe8] sm:$0xff]
                %215 = vst [vmem:[%s155 + $0xe8] sm:$0xff] %v214
                %v216 = vld [vmem:[%s154 + $0xf0] sm:$0xff]
                %217 = vst [vmem:[%s155 + $0xf0] sm:$0xff] %v216
                %v218 = vld [vmem:[%s154 + $0xf8] sm:$0xff]
                %219 = vst [vmem:[%s155 + $0xf8] sm:$0xff] %v218
                %v220 = vld [vmem:[%s154 + $0x100] sm:$0xff]
                %221 = vst [vmem:[%s155 + $0x100] sm:$0xff] %v220
                %v222 = vld [vmem:[%s154 + $0x108] sm:$0xff]
                %223 = vst [vmem:[%s155 + $0x108] sm:$0xff] %v222
                %v224 = vld [vmem:[%s154 + $0x110] sm:$0xff]
                %225 = vst [vmem:[%s155 + $0x110] sm:$0xff] %v224
                %v226 = vld [vmem:[%s154 + $0x118] sm:$0xff]
                %227 = vst [vmem:[%s155 + $0x118] sm:$0xff] %v226
                %v228 = vld [vmem:[%s154 + $0x120] sm:$0xff]
                %229 = vst [vmem:[%s155 + $0x120] sm:$0xff] %v228
                %v230 = vld [vmem:[%s154 + $0x128] sm:$0xff]
                %231 = vst [vmem:[%s155 + $0x128] sm:$0xff] %v230
                %v232 = vld [vmem:[%s154 + $0x130] sm:$0xff]
                %233 = vst [vmem:[%s155 + $0x130] sm:$0xff] %v232
                %v234 = vld [vmem:[%s154 + $0x138] sm:$0xff]
                %235 = vst [vmem:[%s155 + $0x138] sm:$0xff] %v234
                %v236 = vld [vmem:[%s154 + $0x140] sm:$0xff]
                %237 = vst [vmem:[%s155 + $0x140] sm:$0xff] %v236
                %v238 = vld [vmem:[%s154 + $0x148] sm:$0xff]
                %239 = vst [vmem:[%s155 + $0x148] sm:$0xff] %v238
                %v240 = vld [vmem:[%s154 + $0x150] sm:$0xff]
                %241 = vst [vmem:[%s155 + $0x150] sm:$0xff] %v240
                %v242 = vld [vmem:[%s154 + $0x158] sm:$0xff]
                %243 = vst [vmem:[%s155 + $0x158] sm:$0xff] %v242
                %v244 = vld [vmem:[%s154 + $0x160] sm:$0xff]
                %245 = vst [vmem:[%s155 + $0x160] sm:$0xff] %v244
                %v246 = vld [vmem:[%s154 + $0x168] sm:$0xff]
                %247 = vst [vmem:[%s155 + $0x168] sm:$0xff] %v246
                %v248 = vld [vmem:[%s154 + $0x170] sm:$0xff]
                %249 = vst [vmem:[%s155 + $0x170] sm:$0xff] %v248
                %v250 = vld [vmem:[%s154 + $0x178] sm:$0xff]
                %251 = vst [vmem:[%s155 + $0x178] sm:$0xff] %v250
                %v252 = vld [vmem:[%s154 + $0x180] sm:$0xff]
                %253 = vst [vmem:[%s155 + $0x180] sm:$0xff] %v252
                %v254 = vld [vmem:[%s154 + $0x188] sm:$0xff]
                %255 = vst [vmem:[%s155 + $0x188] sm:$0xff] %v254
                %v256 = vld [vmem:[%s154 + $0x190] sm:$0xff]
                %257 = vst [vmem:[%s155 + $0x190] sm:$0xff] %v256
                %v258 = vld [vmem:[%s154 + $0x198] sm:$0xff]
                %259 = vst [vmem:[%s155 + $0x198] sm:$0xff] %v258
                %v260 = vld [vmem:[%s154 + $0x1a0] sm:$0xff]
                %261 = vst [vmem:[%s155 + $0x1a0] sm:$0xff] %v260
                %v262 = vld [vmem:[%s154 + $0x1a8] sm:$0xff]
                %263 = vst [vmem:[%s155 + $0x1a8] sm:$0xff] %v262
                %v264 = vld [vmem:[%s154 + $0x1b0] sm:$0xff]
                %265 = vst [vmem:[%s155 + $0x1b0] sm:$0xff] %v264
                %v266 = vld [vmem:[%s154 + $0x1b8] sm:$0xff]
                %267 = vst [vmem:[%s155 + $0x1b8] sm:$0xff] %v266
                %v268 = vld [vmem:[%s154 + $0x1c0] sm:$0xff]
                %269 = vst [vmem:[%s155 + $0x1c0] sm:$0xff] %v268
                %v270 = vld [vmem:[%s154 + $0x1c8] sm:$0xff]
                %271 = vst [vmem:[%s155 + $0x1c8] sm:$0xff] %v270
                %v272 = vld [vmem:[%s154 + $0x1d0] sm:$0xff]
                %273 = vst [vmem:[%s155 + $0x1d0] sm:$0xff] %v272
                %v274 = vld [vmem:[%s154 + $0x1d8] sm:$0xff]
                %275 = vst [vmem:[%s155 + $0x1d8] sm:$0xff] %v274
                %v276 = vld [vmem:[%s154 + $0x1e0] sm:$0xff]
                %277 = vst [vmem:[%s155 + $0x1e0] sm:$0xff] %v276
                %v278 = vld [vmem:[%s154 + $0x1e8] sm:$0xff]
                %279 = vst [vmem:[%s155 + $0x1e8] sm:$0xff] %v278
                %v280 = vld [vmem:[%s154 + $0x1f0] sm:$0xff]
                %281 = vst [vmem:[%s155 + $0x1f0] sm:$0xff] %v280
                %v282 = vld [vmem:[%s154 + $0x1f8] sm:$0xff]
                %283 = vst [vmem:[%s155 + $0x1f8] sm:$0xff] %v282
              $region52: #{tpu_custom_call.1} parent=46 // loop_footer
                %s153 = sadd.s32 1, %s149
              $region53: #{tpu_custom_call.1} parent=46 // loop_footer_branch
                %148 = sbr.rel target = $region49
              $region54: #{tpu_custom_call.1} parent=46 // loop_exit
                _
            $region47: #{tpu_custom_call.1} parent=31 // pred_fallthru
              _
            %p284 = pneg %p144
            // Predicated region
            $region55: #{tpu_custom_call.1} parent=31 // pred_check
              _
            $region56: #{tpu_custom_call.1} parent=31 // pred_check_branch
              %286 = sbr.rel (%p144) target = $region58
            $region57: #{tpu_custom_call.1} parent=31 // pred_region
              %s287 = sand.u32 512, 7
            $region58: #{tpu_custom_call.1} parent=31 // pred_fallthru
              _
          $region32: #{tpu_custom_call.1} parent=27 // pred_fallthru
            _
          // Predicated region
          $region33: #{tpu_custom_call.1} parent=27 // pred_check
            %p128 = pneg %p124
          $region34: #{tpu_custom_call.1} parent=27 // pred_check_branch
            %130 = sbr.rel (%p128) target = $region36
          $region35: #{tpu_custom_call.1} parent=27 // pred_region
            %s131 = sshll.u32 1, 512
            %s132 = ssub.s32 %s131, 1
            loop: start=0, step=1, limit=1
            $region37: #{tpu_custom_call.1} parent=35 // loop_pre_header
              _
            $region38: #{tpu_custom_call.1} parent=35 // loop_header
              %s134 = sphi 0, %s138
              %p135 = scmp.ge.s32.totalorder %s134, 1
              %s139 = sphi %s1, %s1
              %s140 = sphi [#allocation2], [#allocation2]
            $region39: #{tpu_custom_call.1} parent=35 // loop_header_branch
              %137 = sbr.rel (%p135) target = $region43
            $region40: #{tpu_custom_call.1} parent=35 // loop_body
              %v141 = vld [vmem:[%s139] sm:%s132]
              %142 = vst [vmem:[%s140] sm:%s132] %v141
            $region41: #{tpu_custom_call.1} parent=35 // loop_footer
              %s138 = sadd.s32 1, %s134
            $region42: #{tpu_custom_call.1} parent=35 // loop_footer_branch
              %133 = sbr.rel target = $region38
            $region43: #{tpu_custom_call.1} parent=35 // loop_exit
              _
          $region36: #{tpu_custom_call.1} parent=27 // pred_fallthru
            _
          // Predicated region
          $region59: #{tpu_custom_call.1} parent=27 // pred_check
            _
          $region60: #{tpu_custom_call.1} parent=27 // pred_check_branch
            %290 = sbr.rel (0) target = $region62
          $region61: #{tpu_custom_call.1} parent=27 // pred_region
            %291 = vsyncadd [#allocation3], 8192
          $region62: #{tpu_custom_call.1} parent=27 // pred_fallthru
            _
          %s292 = smul.u32 512, 1
          %s293 = sshll.u32 %s292, 4
          %294 = dma.done [#allocation3], %s293
        $region28: #{tpu_custom_call.1} parent=23 // pred_fallthru
          _
        %v295 = vld [vmem:[%s116] sm:$0xff]
        %v296 = vld [vmem:[%s116 + $0x8] sm:$0xff]
        %v297 = vld [vmem:[%s116 + $0x10] sm:$0xff]
        %v298 = vld [vmem:[%s116 + $0x18] sm:$0xff]
        %v299 = vld [vmem:[%s116 + $0x20] sm:$0xff]
        %v300 = vld [vmem:[%s116 + $0x28] sm:$0xff]
        %v301 = vld [vmem:[%s116 + $0x30] sm:$0xff]
        %v302 = vld [vmem:[%s116 + $0x38] sm:$0xff]
        %v303 = vld [vmem:[%s116 + $0x40] sm:$0xff]
        %v304 = vld [vmem:[%s116 + $0x48] sm:$0xff]
        %v305 = vld [vmem:[%s116 + $0x50] sm:$0xff]
        %v306 = vld [vmem:[%s116 + $0x58] sm:$0xff]
        %v307 = vld [vmem:[%s116 + $0x60] sm:$0xff]
        %v308 = vld [vmem:[%s116 + $0x68] sm:$0xff]
        %v309 = vld [vmem:[%s116 + $0x70] sm:$0xff]
        %v310 = vld [vmem:[%s116 + $0x78] sm:$0xff]
        %v311 = vld [vmem:[%s116 + $0x80] sm:$0xff]
        %v312 = vld [vmem:[%s116 + $0x88] sm:$0xff]
        %v313 = vld [vmem:[%s116 + $0x90] sm:$0xff]
        %v314 = vld [vmem:[%s116 + $0x98] sm:$0xff]
        %v315 = vld [vmem:[%s116 + $0xa0] sm:$0xff]
        %v316 = vld [vmem:[%s116 + $0xa8] sm:$0xff]
        %v317 = vld [vmem:[%s116 + $0xb0] sm:$0xff]
        %v318 = vld [vmem:[%s116 + $0xb8] sm:$0xff]
        %v319 = vld [vmem:[%s116 + $0xc0] sm:$0xff]
        %v320 = vld [vmem:[%s116 + $0xc8] sm:$0xff]
        %v321 = vld [vmem:[%s116 + $0xd0] sm:$0xff]
        %v322 = vld [vmem:[%s116 + $0xd8] sm:$0xff]
        %v323 = vld [vmem:[%s116 + $0xe0] sm:$0xff]
        %v324 = vld [vmem:[%s116 + $0xe8] sm:$0xff]
        %v325 = vld [vmem:[%s116 + $0xf0] sm:$0xff]
        %v326 = vld [vmem:[%s116 + $0xf8] sm:$0xff]
        %v327 = vlaneseq
        %v328 = vand.u32 %v327, 127
        %v329 = vadd.s32 %v328, 128
        %v330 = vadd.s32 %v328, 256
        %v331 = vadd.s32 %v328, 384
        %332 = vset.pattern.permute.xlu0 0
        %333 = vperm.xlu0 %332, %v295
        %v334 = vpop.permute.xlu0 %333
        %335 = vset.pattern.permute.xlu0 0
        %336 = vperm.xlu0 %335, %v296
        %v337 = vpop.permute.xlu0 %336
        %338 = vset.pattern.permute.xlu0 0
        %339 = vperm.xlu0 %338, %v297
        %v340 = vpop.permute.xlu0 %339
        %341 = vset.pattern.permute.xlu0 0
        %342 = vperm.xlu0 %341, %v298
        %v343 = vpop.permute.xlu0 %342
        %344 = vset.pattern.permute.xlu0 0
        %345 = vperm.xlu0 %344, %v299
        %v346 = vpop.permute.xlu0 %345
        %347 = vset.pattern.permute.xlu0 0
        %348 = vperm.xlu0 %347, %v300
        %v349 = vpop.permute.xlu0 %348
        %350 = vset.pattern.permute.xlu0 0
        %351 = vperm.xlu0 %350, %v301
        %v352 = vpop.permute.xlu0 %351
        %353 = vset.pattern.permute.xlu0 0
        %354 = vperm.xlu0 %353, %v302
        %v355 = vpop.permute.xlu0 %354
        %356 = vset.pattern.permute.xlu0 0
        %357 = vperm.xlu0 %356, %v303
        %v358 = vpop.permute.xlu0 %357
        %359 = vset.pattern.permute.xlu0 0
        %360 = vperm.xlu0 %359, %v304
        %v361 = vpop.permute.xlu0 %360
        %362 = vset.pattern.permute.xlu0 0
        %363 = vperm.xlu0 %362, %v305
        %v364 = vpop.permute.xlu0 %363
        %365 = vset.pattern.permute.xlu0 0
        %366 = vperm.xlu0 %365, %v306
        %v367 = vpop.permute.xlu0 %366
        %368 = vset.pattern.permute.xlu0 0
        %369 = vperm.xlu0 %368, %v307
        %v370 = vpop.permute.xlu0 %369
        %371 = vset.pattern.permute.xlu0 0
        %372 = vperm.xlu0 %371, %v308
        %v373 = vpop.permute.xlu0 %372
        %374 = vset.pattern.permute.xlu0 0
        %375 = vperm.xlu0 %374, %v309
        %v376 = vpop.permute.xlu0 %375
        %377 = vset.pattern.permute.xlu0 0
        %378 = vperm.xlu0 %377, %v310
        %v379 = vpop.permute.xlu0 %378
        %380 = vset.pattern.permute.xlu0 0
        %381 = vperm.xlu0 %380, %v311
        %v382 = vpop.permute.xlu0 %381
        %383 = vset.pattern.permute.xlu0 0
        %384 = vperm.xlu0 %383, %v312
        %v385 = vpop.permute.xlu0 %384
        %386 = vset.pattern.permute.xlu0 0
        %387 = vperm.xlu0 %386, %v313
        %v388 = vpop.permute.xlu0 %387
        %389 = vset.pattern.permute.xlu0 0
        %390 = vperm.xlu0 %389, %v314
        %v391 = vpop.permute.xlu0 %390
        %392 = vset.pattern.permute.xlu0 0
        %393 = vperm.xlu0 %392, %v315
        %v394 = vpop.permute.xlu0 %393
        %395 = vset.pattern.permute.xlu0 0
        %396 = vperm.xlu0 %395, %v316
        %v397 = vpop.permute.xlu0 %396
        %398 = vset.pattern.permute.xlu0 0
        %399 = vperm.xlu0 %398, %v317
        %v400 = vpop.permute.xlu0 %399
        %401 = vset.pattern.permute.xlu0 0
        %402 = vperm.xlu0 %401, %v318
        %v403 = vpop.permute.xlu0 %402
        %404 = vset.pattern.permute.xlu0 0
        %405 = vperm.xlu0 %404, %v319
        %v406 = vpop.permute.xlu0 %405
        %407 = vset.pattern.permute.xlu0 0
        %408 = vperm.xlu0 %407, %v320
        %v409 = vpop.permute.xlu0 %408
        %410 = vset.pattern.permute.xlu0 0
        %411 = vperm.xlu0 %410, %v321
        %v412 = vpop.permute.xlu0 %411
        %413 = vset.pattern.permute.xlu0 0
        %414 = vperm.xlu0 %413, %v322
        %v415 = vpop.permute.xlu0 %414
        %416 = vset.pattern.permute.xlu0 0
        %417 = vperm.xlu0 %416, %v323
        %v418 = vpop.permute.xlu0 %417
        %419 = vset.pattern.permute.xlu0 0
        %420 = vperm.xlu0 %419, %v324
        %v421 = vpop.permute.xlu0 %420
        %422 = vset.pattern.permute.xlu0 0
        %423 = vperm.xlu0 %422, %v325
        %v424 = vpop.permute.xlu0 %423
        %425 = vset.pattern.permute.xlu0 0
        %426 = vperm.xlu0 %425, %v326
        %v427 = vpop.permute.xlu0 %426
        %vm428 = vcmp.eq.s32.totalorder %v328, %v334
        %vm429 = vcmp.eq.s32.totalorder %v329, %v334
        %vm430 = vcmp.eq.s32.totalorder %v330, %v334
        %vm431 = vcmp.eq.s32.totalorder %v331, %v334
        %vm432 = vcmp.eq.s32.totalorder %v328, %v337
        %vm433 = vcmp.eq.s32.totalorder %v329, %v337
        %vm434 = vcmp.eq.s32.totalorder %v330, %v337
        %vm435 = vcmp.eq.s32.totalorder %v331, %v337
        %vm436 = vcmp.eq.s32.totalorder %v328, %v340
        %vm437 = vcmp.eq.s32.totalorder %v329, %v340
        %vm438 = vcmp.eq.s32.totalorder %v330, %v340
        %vm439 = vcmp.eq.s32.totalorder %v331, %v340
        %vm440 = vcmp.eq.s32.totalorder %v328, %v343
        %vm441 = vcmp.eq.s32.totalorder %v329, %v343
        %vm442 = vcmp.eq.s32.totalorder %v330, %v343
        %vm443 = vcmp.eq.s32.totalorder %v331, %v343
        %vm444 = vcmp.eq.s32.totalorder %v328, %v346
        %vm445 = vcmp.eq.s32.totalorder %v329, %v346
        %vm446 = vcmp.eq.s32.totalorder %v330, %v346
        %vm447 = vcmp.eq.s32.totalorder %v331, %v346
        %vm448 = vcmp.eq.s32.totalorder %v328, %v349
        %vm449 = vcmp.eq.s32.totalorder %v329, %v349
        %vm450 = vcmp.eq.s32.totalorder %v330, %v349
        %vm451 = vcmp.eq.s32.totalorder %v331, %v349
        %vm452 = vcmp.eq.s32.totalorder %v328, %v352
        %vm453 = vcmp.eq.s32.totalorder %v329, %v352
        %vm454 = vcmp.eq.s32.totalorder %v330, %v352
        %vm455 = vcmp.eq.s32.totalorder %v331, %v352
        %vm456 = vcmp.eq.s32.totalorder %v328, %v355
        %vm457 = vcmp.eq.s32.totalorder %v329, %v355
        %vm458 = vcmp.eq.s32.totalorder %v330, %v355
        %vm459 = vcmp.eq.s32.totalorder %v331, %v355
        %vm460 = vcmp.eq.s32.totalorder %v328, %v358
        %vm461 = vcmp.eq.s32.totalorder %v329, %v358
        %vm462 = vcmp.eq.s32.totalorder %v330, %v358
        %vm463 = vcmp.eq.s32.totalorder %v331, %v358
        %vm464 = vcmp.eq.s32.totalorder %v328, %v361
        %vm465 = vcmp.eq.s32.totalorder %v329, %v361
        %vm466 = vcmp.eq.s32.totalorder %v330, %v361
        %vm467 = vcmp.eq.s32.totalorder %v331, %v361
        %vm468 = vcmp.eq.s32.totalorder %v328, %v364
        %vm469 = vcmp.eq.s32.totalorder %v329, %v364
        %vm470 = vcmp.eq.s32.totalorder %v330, %v364
        %vm471 = vcmp.eq.s32.totalorder %v331, %v364
        %vm472 = vcmp.eq.s32.totalorder %v328, %v367
        %vm473 = vcmp.eq.s32.totalorder %v329, %v367
        %vm474 = vcmp.eq.s32.totalorder %v330, %v367
        %vm475 = vcmp.eq.s32.totalorder %v331, %v367
        %vm476 = vcmp.eq.s32.totalorder %v328, %v370
        %vm477 = vcmp.eq.s32.totalorder %v329, %v370
        %vm478 = vcmp.eq.s32.totalorder %v330, %v370
        %vm479 = vcmp.eq.s32.totalorder %v331, %v370
        %vm480 = vcmp.eq.s32.totalorder %v328, %v373
        %vm481 = vcmp.eq.s32.totalorder %v329, %v373
        %vm482 = vcmp.eq.s32.totalorder %v330, %v373
        %vm483 = vcmp.eq.s32.totalorder %v331, %v373
        %vm484 = vcmp.eq.s32.totalorder %v328, %v376
        %vm485 = vcmp.eq.s32.totalorder %v329, %v376
        %vm486 = vcmp.eq.s32.totalorder %v330, %v376
        %vm487 = vcmp.eq.s32.totalorder %v331, %v376
        %vm488 = vcmp.eq.s32.totalorder %v328, %v379
        %vm489 = vcmp.eq.s32.totalorder %v329, %v379
        %vm490 = vcmp.eq.s32.totalorder %v330, %v379
        %vm491 = vcmp.eq.s32.totalorder %v331, %v379
        %vm492 = vcmp.eq.s32.totalorder %v328, %v382
        %vm493 = vcmp.eq.s32.totalorder %v329, %v382
        %vm494 = vcmp.eq.s32.totalorder %v330, %v382
        %vm495 = vcmp.eq.s32.totalorder %v331, %v382
        %vm496 = vcmp.eq.s32.totalorder %v328, %v385
        %vm497 = vcmp.eq.s32.totalorder %v329, %v385
        %vm498 = vcmp.eq.s32.totalorder %v330, %v385
        %vm499 = vcmp.eq.s32.totalorder %v331, %v385
        %vm500 = vcmp.eq.s32.totalorder %v328, %v388
        %vm501 = vcmp.eq.s32.totalorder %v329, %v388
        %vm502 = vcmp.eq.s32.totalorder %v330, %v388
        %vm503 = vcmp.eq.s32.totalorder %v331, %v388
        %vm504 = vcmp.eq.s32.totalorder %v328, %v391
        %vm505 = vcmp.eq.s32.totalorder %v329, %v391
        %vm506 = vcmp.eq.s32.totalorder %v330, %v391
        %vm507 = vcmp.eq.s32.totalorder %v331, %v391
        %vm508 = vcmp.eq.s32.totalorder %v328, %v394
        %vm509 = vcmp.eq.s32.totalorder %v329, %v394
        %vm510 = vcmp.eq.s32.totalorder %v330, %v394
        %vm511 = vcmp.eq.s32.totalorder %v331, %v394
        %vm512 = vcmp.eq.s32.totalorder %v328, %v397
        %vm513 = vcmp.eq.s32.totalorder %v329, %v397
        %vm514 = vcmp.eq.s32.totalorder %v330, %v397
        %vm515 = vcmp.eq.s32.totalorder %v331, %v397
        %vm516 = vcmp.eq.s32.totalorder %v328, %v400
        %vm517 = vcmp.eq.s32.totalorder %v329, %v400
        %vm518 = vcmp.eq.s32.totalorder %v330, %v400
        %vm519 = vcmp.eq.s32.totalorder %v331, %v400
        %vm520 = vcmp.eq.s32.totalorder %v328, %v403
        %vm521 = vcmp.eq.s32.totalorder %v329, %v403
        %vm522 = vcmp.eq.s32.totalorder %v330, %v403
        %vm523 = vcmp.eq.s32.totalorder %v331, %v403
        %vm524 = vcmp.eq.s32.totalorder %v328, %v406
        %vm525 = vcmp.eq.s32.totalorder %v329, %v406
        %vm526 = vcmp.eq.s32.totalorder %v330, %v406
        %vm527 = vcmp.eq.s32.totalorder %v331, %v406
        %vm528 = vcmp.eq.s32.totalorder %v328, %v409
        %vm529 = vcmp.eq.s32.totalorder %v329, %v409
        %vm530 = vcmp.eq.s32.totalorder %v330, %v409
        %vm531 = vcmp.eq.s32.totalorder %v331, %v409
        %vm532 = vcmp.eq.s32.totalorder %v328, %v412
        %vm533 = vcmp.eq.s32.totalorder %v329, %v412
        %vm534 = vcmp.eq.s32.totalorder %v330, %v412
        %vm535 = vcmp.eq.s32.totalorder %v331, %v412
        %vm536 = vcmp.eq.s32.totalorder %v328, %v415
        %vm537 = vcmp.eq.s32.totalorder %v329, %v415
        %vm538 = vcmp.eq.s32.totalorder %v330, %v415
        %vm539 = vcmp.eq.s32.totalorder %v331, %v415
        %vm540 = vcmp.eq.s32.totalorder %v328, %v418
        %vm541 = vcmp.eq.s32.totalorder %v329, %v418
        %vm542 = vcmp.eq.s32.totalorder %v330, %v418
        %vm543 = vcmp.eq.s32.totalorder %v331, %v418
        %vm544 = vcmp.eq.s32.totalorder %v328, %v421
        %vm545 = vcmp.eq.s32.totalorder %v329, %v421
        %vm546 = vcmp.eq.s32.totalorder %v330, %v421
        %vm547 = vcmp.eq.s32.totalorder %v331, %v421
        %vm548 = vcmp.eq.s32.totalorder %v328, %v424
        %vm549 = vcmp.eq.s32.totalorder %v329, %v424
        %vm550 = vcmp.eq.s32.totalorder %v330, %v424
        %vm551 = vcmp.eq.s32.totalorder %v331, %v424
        %vm552 = vcmp.eq.s32.totalorder %v328, %v427
        %vm553 = vcmp.eq.s32.totalorder %v329, %v427
        %vm554 = vcmp.eq.s32.totalorder %v330, %v427
        %vm555 = vcmp.eq.s32.totalorder %v331, %v427
        %v556 = vsel %vm428, 1, 0
        %v557 = vsel %vm429, 1, 0
        %v558 = vsel %vm430, 1, 0
        %v559 = vsel %vm431, 1, 0
        %v560 = vsel %vm432, 1, 0
        %v561 = vsel %vm433, 1, 0
        %v562 = vsel %vm434, 1, 0
        %v563 = vsel %vm435, 1, 0
        %v564 = vsel %vm436, 1, 0
        %v565 = vsel %vm437, 1, 0
        %v566 = vsel %vm438, 1, 0
        %v567 = vsel %vm439, 1, 0
        %v568 = vsel %vm440, 1, 0
        %v569 = vsel %vm441, 1, 0
        %v570 = vsel %vm442, 1, 0
        %v571 = vsel %vm443, 1, 0
        %v572 = vsel %vm444, 1, 0
        %v573 = vsel %vm445, 1, 0
        %v574 = vsel %vm446, 1, 0
        %v575 = vsel %vm447, 1, 0
        %v576 = vsel %vm448, 1, 0
        %v577 = vsel %vm449, 1, 0
        %v578 = vsel %vm450, 1, 0
        %v579 = vsel %vm451, 1, 0
        %v580 = vsel %vm452, 1, 0
        %v581 = vsel %vm453, 1, 0
        %v582 = vsel %vm454, 1, 0
        %v583 = vsel %vm455, 1, 0
        %v584 = vsel %vm456, 1, 0
        %v585 = vsel %vm457, 1, 0
        %v586 = vsel %vm458, 1, 0
        %v587 = vsel %vm459, 1, 0
        %v588 = vsel %vm460, 1, 0
        %v589 = vsel %vm461, 1, 0
        %v590 = vsel %vm462, 1, 0
        %v591 = vsel %vm463, 1, 0
        %v592 = vsel %vm464, 1, 0
        %v593 = vsel %vm465, 1, 0
        %v594 = vsel %vm466, 1, 0
        %v595 = vsel %vm467, 1, 0
        %v596 = vsel %vm468, 1, 0
        %v597 = vsel %vm469, 1, 0
        %v598 = vsel %vm470, 1, 0
        %v599 = vsel %vm471, 1, 0
        %v600 = vsel %vm472, 1, 0
        %v601 = vsel %vm473, 1, 0
        %v602 = vsel %vm474, 1, 0
        %v603 = vsel %vm475, 1, 0
        %v604 = vsel %vm476, 1, 0
        %v605 = vsel %vm477, 1, 0
        %v606 = vsel %vm478, 1, 0
        %v607 = vsel %vm479, 1, 0
        %v608 = vsel %vm480, 1, 0
        %v609 = vsel %vm481, 1, 0
        %v610 = vsel %vm482, 1, 0
        %v611 = vsel %vm483, 1, 0
        %v612 = vsel %vm484, 1, 0
        %v613 = vsel %vm485, 1, 0
        %v614 = vsel %vm486, 1, 0
        %v615 = vsel %vm487, 1, 0
        %v616 = vsel %vm488, 1, 0
        %v617 = vsel %vm489, 1, 0
        %v618 = vsel %vm490, 1, 0
        %v619 = vsel %vm491, 1, 0
        %v620 = vsel %vm492, 1, 0
        %v621 = vsel %vm493, 1, 0
        %v622 = vsel %vm494, 1, 0
        %v623 = vsel %vm495, 1, 0
        %v624 = vsel %vm496, 1, 0
        %v625 = vsel %vm497, 1, 0
        %v626 = vsel %vm498, 1, 0
        %v627 = vsel %vm499, 1, 0
        %v628 = vsel %vm500, 1, 0
        %v629 = vsel %vm501, 1, 0
        %v630 = vsel %vm502, 1, 0
        %v631 = vsel %vm503, 1, 0
        %v632 = vsel %vm504, 1, 0
        %v633 = vsel %vm505, 1, 0
        %v634 = vsel %vm506, 1, 0
        %v635 = vsel %vm507, 1, 0
        %v636 = vsel %vm508, 1, 0
        %v637 = vsel %vm509, 1, 0
        %v638 = vsel %vm510, 1, 0
        %v639 = vsel %vm511, 1, 0
        %v640 = vsel %vm512, 1, 0
        %v641 = vsel %vm513, 1, 0
        %v642 = vsel %vm514, 1, 0
        %v643 = vsel %vm515, 1, 0
        %v644 = vsel %vm516, 1, 0
        %v645 = vsel %vm517, 1, 0
        %v646 = vsel %vm518, 1, 0
        %v647 = vsel %vm519, 1, 0
        %v648 = vsel %vm520, 1, 0
        %v649 = vsel %vm521, 1, 0
        %v650 = vsel %vm522, 1, 0
        %v651 = vsel %vm523, 1, 0
        %v652 = vsel %vm524, 1, 0
        %v653 = vsel %vm525, 1, 0
        %v654 = vsel %vm526, 1, 0
        %v655 = vsel %vm527, 1, 0
        %v656 = vsel %vm528, 1, 0
        %v657 = vsel %vm529, 1, 0
        %v658 = vsel %vm530, 1, 0
        %v659 = vsel %vm531, 1, 0
        %v660 = vsel %vm532, 1, 0
        %v661 = vsel %vm533, 1, 0
        %v662 = vsel %vm534, 1, 0
        %v663 = vsel %vm535, 1, 0
        %v664 = vsel %vm536, 1, 0
        %v665 = vsel %vm537, 1, 0
        %v666 = vsel %vm538, 1, 0
        %v667 = vsel %vm539, 1, 0
        %v668 = vsel %vm540, 1, 0
        %v669 = vsel %vm541, 1, 0
        %v670 = vsel %vm542, 1, 0
        %v671 = vsel %vm543, 1, 0
        %v672 = vsel %vm544, 1, 0
        %v673 = vsel %vm545, 1, 0
        %v674 = vsel %vm546, 1, 0
        %v675 = vsel %vm547, 1, 0
        %v676 = vsel %vm548, 1, 0
        %v677 = vsel %vm549, 1, 0
        %v678 = vsel %vm550, 1, 0
        %v679 = vsel %vm551, 1, 0
        %v680 = vsel %vm552, 1, 0
        %v681 = vsel %vm553, 1, 0
        %v682 = vsel %vm554, 1, 0
        %v683 = vsel %vm555, 1, 0
        %v684 = vcvt.s32.f32 %v556
        %v685 = vcvt.s32.f32 %v557
        %v686 = vcvt.s32.f32 %v558
        %v687 = vcvt.s32.f32 %v559
        %v688 = vcvt.s32.f32 %v560
        %v689 = vcvt.s32.f32 %v561
        %v690 = vcvt.s32.f32 %v562
        %v691 = vcvt.s32.f32 %v563
        %v692 = vcvt.s32.f32 %v564
        %v693 = vcvt.s32.f32 %v565
        %v694 = vcvt.s32.f32 %v566
        %v695 = vcvt.s32.f32 %v567
        %v696 = vcvt.s32.f32 %v568
        %v697 = vcvt.s32.f32 %v569
        %v698 = vcvt.s32.f32 %v570
        %v699 = vcvt.s32.f32 %v571
        %v700 = vcvt.s32.f32 %v572
        %v701 = vcvt.s32.f32 %v573
        %v702 = vcvt.s32.f32 %v574
        %v703 = vcvt.s32.f32 %v575
        %v704 = vcvt.s32.f32 %v576
        %v705 = vcvt.s32.f32 %v577
        %v706 = vcvt.s32.f32 %v578
        %v707 = vcvt.s32.f32 %v579
        %v708 = vcvt.s32.f32 %v580
        %v709 = vcvt.s32.f32 %v581
        %v710 = vcvt.s32.f32 %v582
        %v711 = vcvt.s32.f32 %v583
        %v712 = vcvt.s32.f32 %v584
        %v713 = vcvt.s32.f32 %v585
        %v714 = vcvt.s32.f32 %v586
        %v715 = vcvt.s32.f32 %v587
        %v716 = vcvt.s32.f32 %v588
        %v717 = vcvt.s32.f32 %v589
        %v718 = vcvt.s32.f32 %v590
        %v719 = vcvt.s32.f32 %v591
        %v720 = vcvt.s32.f32 %v592
        %v721 = vcvt.s32.f32 %v593
        %v722 = vcvt.s32.f32 %v594
        %v723 = vcvt.s32.f32 %v595
        %v724 = vcvt.s32.f32 %v596
        %v725 = vcvt.s32.f32 %v597
        %v726 = vcvt.s32.f32 %v598
        %v727 = vcvt.s32.f32 %v599
        %v728 = vcvt.s32.f32 %v600
        %v729 = vcvt.s32.f32 %v601
        %v730 = vcvt.s32.f32 %v602
        %v731 = vcvt.s32.f32 %v603
        %v732 = vcvt.s32.f32 %v604
        %v733 = vcvt.s32.f32 %v605
        %v734 = vcvt.s32.f32 %v606
        %v735 = vcvt.s32.f32 %v607
        %v736 = vcvt.s32.f32 %v608
        %v737 = vcvt.s32.f32 %v609
        %v738 = vcvt.s32.f32 %v610
        %v739 = vcvt.s32.f32 %v611
        %v740 = vcvt.s32.f32 %v612
        %v741 = vcvt.s32.f32 %v613
        %v742 = vcvt.s32.f32 %v614
        %v743 = vcvt.s32.f32 %v615
        %v744 = vcvt.s32.f32 %v616
        %v745 = vcvt.s32.f32 %v617
        %v746 = vcvt.s32.f32 %v618
        %v747 = vcvt.s32.f32 %v619
        %v748 = vcvt.s32.f32 %v620
        %v749 = vcvt.s32.f32 %v621
        %v750 = vcvt.s32.f32 %v622
        %v751 = vcvt.s32.f32 %v623
        %v752 = vcvt.s32.f32 %v624
        %v753 = vcvt.s32.f32 %v625
        %v754 = vcvt.s32.f32 %v626
        %v755 = vcvt.s32.f32 %v627
        %v756 = vcvt.s32.f32 %v628
        %v757 = vcvt.s32.f32 %v629
        %v758 = vcvt.s32.f32 %v630
        %v759 = vcvt.s32.f32 %v631
        %v760 = vcvt.s32.f32 %v632
        %v761 = vcvt.s32.f32 %v633
        %v762 = vcvt.s32.f32 %v634
        %v763 = vcvt.s32.f32 %v635
        %v764 = vcvt.s32.f32 %v636
        %v765 = vcvt.s32.f32 %v637
        %v766 = vcvt.s32.f32 %v638
        %v767 = vcvt.s32.f32 %v639
        %v768 = vcvt.s32.f32 %v640
        %v769 = vcvt.s32.f32 %v641
        %v770 = vcvt.s32.f32 %v642
        %v771 = vcvt.s32.f32 %v643
        %v772 = vcvt.s32.f32 %v644
        %v773 = vcvt.s32.f32 %v645
        %v774 = vcvt.s32.f32 %v646
        %v775 = vcvt.s32.f32 %v647
        %v776 = vcvt.s32.f32 %v648
        %v777 = vcvt.s32.f32 %v649
        %v778 = vcvt.s32.f32 %v650
        %v779 = vcvt.s32.f32 %v651
        %v780 = vcvt.s32.f32 %v652
        %v781 = vcvt.s32.f32 %v653
        %v782 = vcvt.s32.f32 %v654
        %v783 = vcvt.s32.f32 %v655
        %v784 = vcvt.s32.f32 %v656
        %v785 = vcvt.s32.f32 %v657
        %v786 = vcvt.s32.f32 %v658
        %v787 = vcvt.s32.f32 %v659
        %v788 = vcvt.s32.f32 %v660
        %v789 = vcvt.s32.f32 %v661
        %v790 = vcvt.s32.f32 %v662
        %v791 = vcvt.s32.f32 %v663
        %v792 = vcvt.s32.f32 %v664
        %v793 = vcvt.s32.f32 %v665
        %v794 = vcvt.s32.f32 %v666
        %v795 = vcvt.s32.f32 %v667
        %v796 = vcvt.s32.f32 %v668
        %v797 = vcvt.s32.f32 %v669
        %v798 = vcvt.s32.f32 %v670
        %v799 = vcvt.s32.f32 %v671
        %v800 = vcvt.s32.f32 %v672
        %v801 = vcvt.s32.f32 %v673
        %v802 = vcvt.s32.f32 %v674
        %v803 = vcvt.s32.f32 %v675
        %v804 = vcvt.s32.f32 %v676
        %v805 = vcvt.s32.f32 %v677
        %v806 = vcvt.s32.f32 %v678
        %v807 = vcvt.s32.f32 %v679
        %v808 = vcvt.s32.f32 %v680
        %v809 = vcvt.s32.f32 %v681
        %v810 = vcvt.s32.f32 %v682
        %v811 = vcvt.s32.f32 %v683
        %v812 = vld [vmem:[#allocation2] sm:$0xff]
        %v813 = vld [vmem:[#allocation2 + $0x8] sm:$0xff]
        %v814 = vld [vmem:[#allocation2 + $0x10] sm:$0xff]
        %v815 = vld [vmem:[#allocation2 + $0x18] sm:$0xff]
        %v816 = vld [vmem:[#allocation2 + $0x20] sm:$0xff]
        %v817 = vld [vmem:[#allocation2 + $0x28] sm:$0xff]
        %v818 = vld [vmem:[#allocation2 + $0x30] sm:$0xff]
        %v819 = vld [vmem:[#allocation2 + $0x38] sm:$0xff]
        %v820 = vld [vmem:[#allocation2 + $0x40] sm:$0xff]
        %v821 = vld [vmem:[#allocation2 + $0x48] sm:$0xff]
        %v822 = vld [vmem:[#allocation2 + $0x50] sm:$0xff]
        %v823 = vld [vmem:[#allocation2 + $0x58] sm:$0xff]
        %v824 = vld [vmem:[#allocation2 + $0x60] sm:$0xff]
        %v825 = vld [vmem:[#allocation2 + $0x68] sm:$0xff]
        %v826 = vld [vmem:[#allocation2 + $0x70] sm:$0xff]
        %v827 = vld [vmem:[#allocation2 + $0x78] sm:$0xff]
        %v828 = vld [vmem:[#allocation2 + $0x80] sm:$0xff]
        %v829 = vld [vmem:[#allocation2 + $0x88] sm:$0xff]
        %v830 = vld [vmem:[#allocation2 + $0x90] sm:$0xff]
        %v831 = vld [vmem:[#allocation2 + $0x98] sm:$0xff]
        %v832 = vld [vmem:[#allocation2 + $0xa0] sm:$0xff]
        %v833 = vld [vmem:[#allocation2 + $0xa8] sm:$0xff]
        %v834 = vld [vmem:[#allocation2 + $0xb0] sm:$0xff]
        %v835 = vld [vmem:[#allocation2 + $0xb8] sm:$0xff]
        %v836 = vld [vmem:[#allocation2 + $0xc0] sm:$0xff]
        %v837 = vld [vmem:[#allocation2 + $0xc8] sm:$0xff]
        %v838 = vld [vmem:[#allocation2 + $0xd0] sm:$0xff]
        %v839 = vld [vmem:[#allocation2 + $0xd8] sm:$0xff]
        %v840 = vld [vmem:[#allocation2 + $0xe0] sm:$0xff]
        %v841 = vld [vmem:[#allocation2 + $0xe8] sm:$0xff]
        %v842 = vld [vmem:[#allocation2 + $0xf0] sm:$0xff]
        %v843 = vld [vmem:[#allocation2 + $0xf8] sm:$0xff]
        %v844 = vld [vmem:[#allocation2 + $0x100] sm:$0xff]
        %v845 = vld [vmem:[#allocation2 + $0x108] sm:$0xff]
        %v846 = vld [vmem:[#allocation2 + $0x110] sm:$0xff]
        %v847 = vld [vmem:[#allocation2 + $0x118] sm:$0xff]
        %v848 = vld [vmem:[#allocation2 + $0x120] sm:$0xff]
        %v849 = vld [vmem:[#allocation2 + $0x128] sm:$0xff]
        %v850 = vld [vmem:[#allocation2 + $0x130] sm:$0xff]
        %v851 = vld [vmem:[#allocation2 + $0x138] sm:$0xff]
        %v852 = vld [vmem:[#allocation2 + $0x140] sm:$0xff]
        %v853 = vld [vmem:[#allocation2 + $0x148] sm:$0xff]
        %v854 = vld [vmem:[#allocation2 + $0x150] sm:$0xff]
        %v855 = vld [vmem:[#allocation2 + $0x158] sm:$0xff]
        %v856 = vld [vmem:[#allocation2 + $0x160] sm:$0xff]
        %v857 = vld [vmem:[#allocation2 + $0x168] sm:$0xff]
        %v858 = vld [vmem:[#allocation2 + $0x170] sm:$0xff]
        %v859 = vld [vmem:[#allocation2 + $0x178] sm:$0xff]
        %v860 = vld [vmem:[#allocation2 + $0x180] sm:$0xff]
        %v861 = vld [vmem:[#allocation2 + $0x188] sm:$0xff]
        %v862 = vld [vmem:[#allocation2 + $0x190] sm:$0xff]
        %v863 = vld [vmem:[#allocation2 + $0x198] sm:$0xff]
        %v864 = vld [vmem:[#allocation2 + $0x1a0] sm:$0xff]
        %v865 = vld [vmem:[#allocation2 + $0x1a8] sm:$0xff]
        %v866 = vld [vmem:[#allocation2 + $0x1b0] sm:$0xff]
        %v867 = vld [vmem:[#allocation2 + $0x1b8] sm:$0xff]
        %v868 = vld [vmem:[#allocation2 + $0x1c0] sm:$0xff]
        %v869 = vld [vmem:[#allocation2 + $0x1c8] sm:$0xff]
        %v870 = vld [vmem:[#allocation2 + $0x1d0] sm:$0xff]
        %v871 = vld [vmem:[#allocation2 + $0x1d8] sm:$0xff]
        %v872 = vld [vmem:[#allocation2 + $0x1e0] sm:$0xff]
        %v873 = vld [vmem:[#allocation2 + $0x1e8] sm:$0xff]
        %v874 = vld [vmem:[#allocation2 + $0x1f0] sm:$0xff]
        %v875 = vld [vmem:[#allocation2 + $0x1f8] sm:$0xff]
        %876 = vmatprep.subr.mxu0 0.0
        %877 = vmatpush1.msra.mxu0 %v827
        %878 = vmatprep.subr.mxu0 0.0
        %879 = vmatpush1.msra.mxu0 %v826
        %880 = vmatprep.subr.mxu0 0.0
        %881 = vmatpush1.msra.mxu0 %v825
        %882 = vmatprep.subr.mxu0 0.0
        %883 = vmatpush1.msra.mxu0 %v824
        %884 = vmatprep.subr.mxu0 0.0
        %885 = vmatpush1.msra.mxu0 %v823
        %886 = vmatprep.subr.mxu0 0.0
        %887 = vmatpush1.msra.mxu0 %v822
        %888 = vmatprep.subr.mxu0 0.0
        %889 = vmatpush1.msra.mxu0 %v821
        %890 = vmatprep.subr.mxu0 0.0
        %891 = vmatpush1.msra.mxu0 %v820
        %892 = vmatprep.subr.mxu0 0.0
        %893 = vmatpush1.msra.mxu0 %v819
        %894 = vmatprep.subr.mxu0 0.0
        %895 = vmatpush1.msra.mxu0 %v818
        %896 = vmatprep.subr.mxu0 0.0
        %897 = vmatpush1.msra.mxu0 %v817
        %898 = vmatprep.subr.mxu0 0.0
        %899 = vmatpush1.msra.mxu0 %v816
        %900 = vmatprep.subr.mxu0 0.0
        %901 = vmatpush1.msra.mxu0 %v815
        %902 = vmatprep.subr.mxu0 0.0
        %903 = vmatpush1.msra.mxu0 %v814
        %904 = vmatprep.subr.mxu0 0.0
        %905 = vmatpush1.msra.mxu0 %v813
        %906 = vmatprep.subr.mxu0 0.0
        %907 = vmatpush1.msra.mxu0 %v812
        %908 = vmatprep.subr.mxu0 0.0
        %909 = vmatpush2.msra.mxu0 %v843
        %910 = vmatprep.subr.mxu0 0.0
        %911 = vmatpush2.msra.mxu0 %v842
        %912 = vmatprep.subr.mxu0 0.0
        %913 = vmatpush2.msra.mxu0 %v841
        %914 = vmatprep.subr.mxu0 0.0
        %915 = vmatpush2.msra.mxu0 %v840
        %916 = vmatprep.subr.mxu0 0.0
        %917 = vmatpush2.msra.mxu0 %v839
        %918 = vmatprep.subr.mxu0 0.0
        %919 = vmatpush2.msra.mxu0 %v838
        %920 = vmatprep.subr.mxu0 0.0
        %921 = vmatpush2.msra.mxu0 %v837
        %922 = vmatprep.subr.mxu0 0.0
        %923 = vmatpush2.msra.mxu0 %v836
        %924 = vmatprep.subr.mxu0 0.0
        %925 = vmatpush2.msra.mxu0 %v835
        %926 = vmatprep.subr.mxu0 0.0
        %927 = vmatpush2.msra.mxu0 %v834
        %928 = vmatprep.subr.mxu0 0.0
        %929 = vmatpush2.msra.mxu0 %v833
        %930 = vmatprep.subr.mxu0 0.0
        %931 = vmatpush2.msra.mxu0 %v832
        %932 = vmatprep.subr.mxu0 0.0
        %933 = vmatpush2.msra.mxu0 %v831
        %934 = vmatprep.subr.mxu0 0.0
        %935 = vmatpush2.msra.mxu0 %v830
        %936 = vmatprep.subr.mxu0 0.0
        %937 = vmatpush2.msra.mxu0 %v829
        %938 = vmatprep.subr.mxu0 0.0
        %939 = vmatpush2.msra.mxu0 %v828
        %940 = vmatprep.mubr.f32.mxu0 %v685
        %941 = vmatmul.mubr.f32.gmra.mxu0 %v684
        %v942 = vpop.f32.mrf.mxu0
        %v943 = vadd.f32 0.0, %v942
        %v944 = vpop.f32.mrf.mxu0
        %945 = vmatprep.mubr.f32.mxu0 %v689
        %946 = vmatmul.mubr.f32.gmra.mxu0 %v688
        %v947 = vpop.f32.mrf.mxu0
        %v948 = vadd.f32 0.0, %v947
        %v949 = vpop.f32.mrf.mxu0
        %950 = vmatprep.mubr.f32.mxu0 %v693
        %951 = vmatmul.mubr.f32.gmra.mxu0 %v692
        %v952 = vpop.f32.mrf.mxu0
        %v953 = vadd.f32 0.0, %v952
        %v954 = vpop.f32.mrf.mxu0
        %955 = vmatprep.mubr.f32.mxu0 %v697
        %956 = vmatmul.mubr.f32.gmra.mxu0 %v696
        %v957 = vpop.f32.mrf.mxu0
        %v958 = vadd.f32 0.0, %v957
        %v959 = vpop.f32.mrf.mxu0
        %960 = vmatprep.mubr.f32.mxu0 %v701
        %961 = vmatmul.mubr.f32.gmra.mxu0 %v700
        %v962 = vpop.f32.mrf.mxu0
        %v963 = vadd.f32 0.0, %v962
        %v964 = vpop.f32.mrf.mxu0
        %965 = vmatprep.mubr.f32.mxu0 %v705
        %966 = vmatmul.mubr.f32.gmra.mxu0 %v704
        %v967 = vpop.f32.mrf.mxu0
        %v968 = vadd.f32 0.0, %v967
        %v969 = vpop.f32.mrf.mxu0
        %970 = vmatprep.mubr.f32.mxu0 %v709
        %971 = vmatmul.mubr.f32.gmra.mxu0 %v708
        %v972 = vpop.f32.mrf.mxu0
        %v973 = vadd.f32 0.0, %v972
        %v974 = vpop.f32.mrf.mxu0
        %975 = vmatprep.mubr.f32.mxu0 %v713
        %976 = vmatmul.mubr.f32.gmra.mxu0 %v712
        %v977 = vpop.f32.mrf.mxu0
        %v978 = vadd.f32 0.0, %v977
        %v979 = vpop.f32.mrf.mxu0
        %980 = vmatprep.mubr.f32.mxu0 %v717
        %981 = vmatmul.mubr.f32.gmra.mxu0 %v716
        %v982 = vpop.f32.mrf.mxu0
        %v983 = vadd.f32 0.0, %v982
        %v984 = vpop.f32.mrf.mxu0
        %985 = vmatprep.mubr.f32.mxu0 %v721
        %986 = vmatmul.mubr.f32.gmra.mxu0 %v720
        %v987 = vpop.f32.mrf.mxu0
        %v988 = vadd.f32 0.0, %v987
        %v989 = vpop.f32.mrf.mxu0
        %990 = vmatprep.mubr.f32.mxu0 %v725
        %991 = vmatmul.mubr.f32.gmra.mxu0 %v724
        %v992 = vpop.f32.mrf.mxu0
        %v993 = vadd.f32 0.0, %v992
        %v994 = vpop.f32.mrf.mxu0
        %995 = vmatprep.mubr.f32.mxu0 %v729
        %996 = vmatmul.mubr.f32.gmra.mxu0 %v728
        %v997 = vpop.f32.mrf.mxu0
        %v998 = vadd.f32 0.0, %v997
        %v999 = vpop.f32.mrf.mxu0
        %1000 = vmatprep.mubr.f32.mxu0 %v733
        %1001 = vmatmul.mubr.f32.gmra.mxu0 %v732
        %v1002 = vpop.f32.mrf.mxu0
        %v1003 = vadd.f32 0.0, %v1002
        %v1004 = vpop.f32.mrf.mxu0
        %1005 = vmatprep.mubr.f32.mxu0 %v737
        %1006 = vmatmul.mubr.f32.gmra.mxu0 %v736
        %v1007 = vpop.f32.mrf.mxu0
        %v1008 = vadd.f32 0.0, %v1007
        %v1009 = vpop.f32.mrf.mxu0
        %1010 = vmatprep.mubr.f32.mxu0 %v741
        %1011 = vmatmul.mubr.f32.gmra.mxu0 %v740
        %v1012 = vpop.f32.mrf.mxu0
        %v1013 = vadd.f32 0.0, %v1012
        %v1014 = vpop.f32.mrf.mxu0
        %1015 = vmatprep.mubr.f32.mxu0 %v745
        %1016 = vmatmul.mubr.f32.gmra.mxu0 %v744
        %v1017 = vpop.f32.mrf.mxu0
        %v1018 = vadd.f32 0.0, %v1017
        %v1019 = vpop.f32.mrf.mxu0
        %1020 = vmatprep.mubr.f32.mxu0 %v749
        %1021 = vmatmul.mubr.f32.gmra.mxu0 %v748
        %v1022 = vpop.f32.mrf.mxu0
        %v1023 = vadd.f32 0.0, %v1022
        %v1024 = vpop.f32.mrf.mxu0
        %1025 = vmatprep.mubr.f32.mxu0 %v753
        %1026 = vmatmul.mubr.f32.gmra.mxu0 %v752
        %v1027 = vpop.f32.mrf.mxu0
        %v1028 = vadd.f32 0.0, %v1027
        %v1029 = vpop.f32.mrf.mxu0
        %1030 = vmatprep.mubr.f32.mxu0 %v757
        %1031 = vmatmul.mubr.f32.gmra.mxu0 %v756
        %v1032 = vpop.f32.mrf.mxu0
        %v1033 = vadd.f32 0.0, %v1032
        %v1034 = vpop.f32.mrf.mxu0
        %1035 = vmatprep.mubr.f32.mxu0 %v761
        %1036 = vmatmul.mubr.f32.gmra.mxu0 %v760
        %v1037 = vpop.f32.mrf.mxu0
        %v1038 = vadd.f32 0.0, %v1037
        %v1039 = vpop.f32.mrf.mxu0
        %1040 = vmatprep.mubr.f32.mxu0 %v765
        %1041 = vmatmul.mubr.f32.gmra.mxu0 %v764
        %v1042 = vpop.f32.mrf.mxu0
        %v1043 = vadd.f32 0.0, %v1042
        %v1044 = vpop.f32.mrf.mxu0
        %1045 = vmatprep.mubr.f32.mxu0 %v769
        %1046 = vmatmul.mubr.f32.gmra.mxu0 %v768
        %v1047 = vpop.f32.mrf.mxu0
        %v1048 = vadd.f32 0.0, %v1047
        %v1049 = vpop.f32.mrf.mxu0
        %1050 = vmatprep.mubr.f32.mxu0 %v773
        %1051 = vmatmul.mubr.f32.gmra.mxu0 %v772
        %v1052 = vpop.f32.mrf.mxu0
        %v1053 = vadd.f32 0.0, %v1052
        %v1054 = vpop.f32.mrf.mxu0
        %1055 = vmatprep.mubr.f32.mxu0 %v777
        %1056 = vmatmul.mubr.f32.gmra.mxu0 %v776
        %v1057 = vpop.f32.mrf.mxu0
        %v1058 = vadd.f32 0.0, %v1057
        %v1059 = vpop.f32.mrf.mxu0
        %1060 = vmatprep.mubr.f32.mxu0 %v781
        %1061 = vmatmul.mubr.f32.gmra.mxu0 %v780
        %v1062 = vpop.f32.mrf.mxu0
        %v1063 = vadd.f32 0.0, %v1062
        %v1064 = vpop.f32.mrf.mxu0
        %1065 = vmatprep.mubr.f32.mxu0 %v785
        %1066 = vmatmul.mubr.f32.gmra.mxu0 %v784
        %v1067 = vpop.f32.mrf.mxu0
        %v1068 = vadd.f32 0.0, %v1067
        %v1069 = vpop.f32.mrf.mxu0
        %1070 = vmatprep.mubr.f32.mxu0 %v789
        %1071 = vmatmul.mubr.f32.gmra.mxu0 %v788
        %v1072 = vpop.f32.mrf.mxu0
        %v1073 = vadd.f32 0.0, %v1072
        %v1074 = vpop.f32.mrf.mxu0
        %1075 = vmatprep.mubr.f32.mxu0 %v793
        %1076 = vmatmul.mubr.f32.gmra.mxu0 %v792
        %v1077 = vpop.f32.mrf.mxu0
        %v1078 = vadd.f32 0.0, %v1077
        %v1079 = vpop.f32.mrf.mxu0
        %1080 = vmatprep.mubr.f32.mxu0 %v797
        %1081 = vmatmul.mubr.f32.gmra.mxu0 %v796
        %v1082 = vpop.f32.mrf.mxu0
        %v1083 = vadd.f32 0.0, %v1082
        %v1084 = vpop.f32.mrf.mxu0
        %1085 = vmatprep.mubr.f32.mxu0 %v801
        %1086 = vmatmul.mubr.f32.gmra.mxu0 %v800
        %v1087 = vpop.f32.mrf.mxu0
        %v1088 = vadd.f32 0.0, %v1087
        %v1089 = vpop.f32.mrf.mxu0
        %1090 = vmatprep.mubr.f32.mxu0 %v805
        %1091 = vmatmul.mubr.f32.gmra.mxu0 %v804
        %v1092 = vpop.f32.mrf.mxu0
        %v1093 = vadd.f32 0.0, %v1092
        %v1094 = vpop.f32.mrf.mxu0
        %1095 = vmatprep.mubr.f32.mxu0 %v809
        %1096 = vmatmul.mubr.f32.gmra.mxu0 %v808
        %v1097 = vpop.f32.mrf.mxu0
        %v1098 = vadd.f32 0.0, %v1097
        %v1099 = vpop.f32.mrf.mxu0
        %1100 = vdwg.mxu0
        %1101 = vmatprep.subr.mxu0 0.0
        %1102 = vmatpush1.msra.mxu0 %v859
        %1103 = vmatprep.subr.mxu0 0.0
        %1104 = vmatpush1.msra.mxu0 %v858
        %1105 = vmatprep.subr.mxu0 0.0
        %1106 = vmatpush1.msra.mxu0 %v857
        %1107 = vmatprep.subr.mxu0 0.0
        %1108 = vmatpush1.msra.mxu0 %v856
        %1109 = vmatprep.subr.mxu0 0.0
        %1110 = vmatpush1.msra.mxu0 %v855
        %1111 = vmatprep.subr.mxu0 0.0
        %1112 = vmatpush1.msra.mxu0 %v854
        %1113 = vmatprep.subr.mxu0 0.0
        %1114 = vmatpush1.msra.mxu0 %v853
        %1115 = vmatprep.subr.mxu0 0.0
        %1116 = vmatpush1.msra.mxu0 %v852
        %1117 = vmatprep.subr.mxu0 0.0
        %1118 = vmatpush1.msra.mxu0 %v851
        %1119 = vmatprep.subr.mxu0 0.0
        %1120 = vmatpush1.msra.mxu0 %v850
        %1121 = vmatprep.subr.mxu0 0.0
        %1122 = vmatpush1.msra.mxu0 %v849
        %1123 = vmatprep.subr.mxu0 0.0
        %1124 = vmatpush1.msra.mxu0 %v848
        %1125 = vmatprep.subr.mxu0 0.0
        %1126 = vmatpush1.msra.mxu0 %v847
        %1127 = vmatprep.subr.mxu0 0.0
        %1128 = vmatpush1.msra.mxu0 %v846
        %1129 = vmatprep.subr.mxu0 0.0
        %1130 = vmatpush1.msra.mxu0 %v845
        %1131 = vmatprep.subr.mxu0 0.0
        %1132 = vmatpush1.msra.mxu0 %v844
        %1133 = vmatprep.subr.mxu0 0.0
        %1134 = vmatpush2.msra.mxu0 %v875
        %1135 = vmatprep.subr.mxu0 0.0
        %1136 = vmatpush2.msra.mxu0 %v874
        %1137 = vmatprep.subr.mxu0 0.0
        %1138 = vmatpush2.msra.mxu0 %v873
        %1139 = vmatprep.subr.mxu0 0.0
        %1140 = vmatpush2.msra.mxu0 %v872
        %1141 = vmatprep.subr.mxu0 0.0
        %1142 = vmatpush2.msra.mxu0 %v871
        %1143 = vmatprep.subr.mxu0 0.0
        %1144 = vmatpush2.msra.mxu0 %v870
        %1145 = vmatprep.subr.mxu0 0.0
        %1146 = vmatpush2.msra.mxu0 %v869
        %1147 = vmatprep.subr.mxu0 0.0
        %1148 = vmatpush2.msra.mxu0 %v868
        %1149 = vmatprep.subr.mxu0 0.0
        %1150 = vmatpush2.msra.mxu0 %v867
        %1151 = vmatprep.subr.mxu0 0.0
        %1152 = vmatpush2.msra.mxu0 %v866
        %1153 = vmatprep.subr.mxu0 0.0
        %1154 = vmatpush2.msra.mxu0 %v865
        %1155 = vmatprep.subr.mxu0 0.0
        %1156 = vmatpush2.msra.mxu0 %v864
        %1157 = vmatprep.subr.mxu0 0.0
        %1158 = vmatpush2.msra.mxu0 %v863
        %1159 = vmatprep.subr.mxu0 0.0
        %1160 = vmatpush2.msra.mxu0 %v862
        %1161 = vmatprep.subr.mxu0 0.0
        %1162 = vmatpush2.msra.mxu0 %v861
        %1163 = vmatprep.subr.mxu0 0.0
        %1164 = vmatpush2.msra.mxu0 %v860
        %1165 = vmatprep.mubr.f32.mxu0 %v687
        %1166 = vmatmul.mubr.f32.gmra.mxu0 %v686
        %v1167 = vpop.f32.mrf.mxu0
        %v1168 = vadd.f32 %v943, %v1167
        %v1169 = vpop.f32.mrf.mxu0
        %1170 = vmatprep.mubr.f32.mxu0 %v691
        %1171 = vmatmul.mubr.f32.gmra.mxu0 %v690
        %v1172 = vpop.f32.mrf.mxu0
        %v1173 = vadd.f32 %v948, %v1172
        %v1174 = vpop.f32.mrf.mxu0
        %1175 = vmatprep.mubr.f32.mxu0 %v695
        %1176 = vmatmul.mubr.f32.gmra.mxu0 %v694
        %v1177 = vpop.f32.mrf.mxu0
        %v1178 = vadd.f32 %v953, %v1177
        %v1179 = vpop.f32.mrf.mxu0
        %1180 = vmatprep.mubr.f32.mxu0 %v699
        %1181 = vmatmul.mubr.f32.gmra.mxu0 %v698
        %v1182 = vpop.f32.mrf.mxu0
        %v1183 = vadd.f32 %v958, %v1182
        %v1184 = vpop.f32.mrf.mxu0
        %1185 = vmatprep.mubr.f32.mxu0 %v703
        %1186 = vmatmul.mubr.f32.gmra.mxu0 %v702
        %v1187 = vpop.f32.mrf.mxu0
        %v1188 = vadd.f32 %v963, %v1187
        %v1189 = vpop.f32.mrf.mxu0
        %1190 = vmatprep.mubr.f32.mxu0 %v707
        %1191 = vmatmul.mubr.f32.gmra.mxu0 %v706
        %v1192 = vpop.f32.mrf.mxu0
        %v1193 = vadd.f32 %v968, %v1192
        %v1194 = vpop.f32.mrf.mxu0
        %1195 = vmatprep.mubr.f32.mxu0 %v711
        %1196 = vmatmul.mubr.f32.gmra.mxu0 %v710
        %v1197 = vpop.f32.mrf.mxu0
        %v1198 = vadd.f32 %v973, %v1197
        %v1199 = vpop.f32.mrf.mxu0
        %1200 = vmatprep.mubr.f32.mxu0 %v715
        %1201 = vmatmul.mubr.f32.gmra.mxu0 %v714
        %v1202 = vpop.f32.mrf.mxu0
        %v1203 = vadd.f32 %v978, %v1202
        %v1204 = vpop.f32.mrf.mxu0
        %1205 = vmatprep.mubr.f32.mxu0 %v719
        %1206 = vmatmul.mubr.f32.gmra.mxu0 %v718
        %v1207 = vpop.f32.mrf.mxu0
        %v1208 = vadd.f32 %v983, %v1207
        %v1209 = vpop.f32.mrf.mxu0
        %1210 = vmatprep.mubr.f32.mxu0 %v723
        %1211 = vmatmul.mubr.f32.gmra.mxu0 %v722
        %v1212 = vpop.f32.mrf.mxu0
        %v1213 = vadd.f32 %v988, %v1212
        %v1214 = vpop.f32.mrf.mxu0
        %1215 = vmatprep.mubr.f32.mxu0 %v727
        %1216 = vmatmul.mubr.f32.gmra.mxu0 %v726
        %v1217 = vpop.f32.mrf.mxu0
        %v1218 = vadd.f32 %v993, %v1217
        %v1219 = vpop.f32.mrf.mxu0
        %1220 = vmatprep.mubr.f32.mxu0 %v731
        %1221 = vmatmul.mubr.f32.gmra.mxu0 %v730
        %v1222 = vpop.f32.mrf.mxu0
        %v1223 = vadd.f32 %v998, %v1222
        %v1224 = vpop.f32.mrf.mxu0
        %1225 = vmatprep.mubr.f32.mxu0 %v735
        %1226 = vmatmul.mubr.f32.gmra.mxu0 %v734
        %v1227 = vpop.f32.mrf.mxu0
        %v1228 = vadd.f32 %v1003, %v1227
        %v1229 = vpop.f32.mrf.mxu0
        %1230 = vmatprep.mubr.f32.mxu0 %v739
        %1231 = vmatmul.mubr.f32.gmra.mxu0 %v738
        %v1232 = vpop.f32.mrf.mxu0
        %v1233 = vadd.f32 %v1008, %v1232
        %v1234 = vpop.f32.mrf.mxu0
        %1235 = vmatprep.mubr.f32.mxu0 %v743
        %1236 = vmatmul.mubr.f32.gmra.mxu0 %v742
        %v1237 = vpop.f32.mrf.mxu0
        %v1238 = vadd.f32 %v1013, %v1237
        %v1239 = vpop.f32.mrf.mxu0
        %1240 = vmatprep.mubr.f32.mxu0 %v747
        %1241 = vmatmul.mubr.f32.gmra.mxu0 %v746
        %v1242 = vpop.f32.mrf.mxu0
        %v1243 = vadd.f32 %v1018, %v1242
        %v1244 = vpop.f32.mrf.mxu0
        %1245 = vmatprep.mubr.f32.mxu0 %v751
        %1246 = vmatmul.mubr.f32.gmra.mxu0 %v750
        %v1247 = vpop.f32.mrf.mxu0
        %v1248 = vadd.f32 %v1023, %v1247
        %v1249 = vpop.f32.mrf.mxu0
        %1250 = vmatprep.mubr.f32.mxu0 %v755
        %1251 = vmatmul.mubr.f32.gmra.mxu0 %v754
        %v1252 = vpop.f32.mrf.mxu0
        %v1253 = vadd.f32 %v1028, %v1252
        %v1254 = vpop.f32.mrf.mxu0
        %1255 = vmatprep.mubr.f32.mxu0 %v759
        %1256 = vmatmul.mubr.f32.gmra.mxu0 %v758
        %v1257 = vpop.f32.mrf.mxu0
        %v1258 = vadd.f32 %v1033, %v1257
        %v1259 = vpop.f32.mrf.mxu0
        %1260 = vmatprep.mubr.f32.mxu0 %v763
        %1261 = vmatmul.mubr.f32.gmra.mxu0 %v762
        %v1262 = vpop.f32.mrf.mxu0
        %v1263 = vadd.f32 %v1038, %v1262
        %v1264 = vpop.f32.mrf.mxu0
        %1265 = vmatprep.mubr.f32.mxu0 %v767
        %1266 = vmatmul.mubr.f32.gmra.mxu0 %v766
        %v1267 = vpop.f32.mrf.mxu0
        %v1268 = vadd.f32 %v1043, %v1267
        %v1269 = vpop.f32.mrf.mxu0
        %1270 = vmatprep.mubr.f32.mxu0 %v771
        %1271 = vmatmul.mubr.f32.gmra.mxu0 %v770
        %v1272 = vpop.f32.mrf.mxu0
        %v1273 = vadd.f32 %v1048, %v1272
        %v1274 = vpop.f32.mrf.mxu0
        %1275 = vmatprep.mubr.f32.mxu0 %v775
        %1276 = vmatmul.mubr.f32.gmra.mxu0 %v774
        %v1277 = vpop.f32.mrf.mxu0
        %v1278 = vadd.f32 %v1053, %v1277
        %v1279 = vpop.f32.mrf.mxu0
        %1280 = vmatprep.mubr.f32.mxu0 %v779
        %1281 = vmatmul.mubr.f32.gmra.mxu0 %v778
        %v1282 = vpop.f32.mrf.mxu0
        %v1283 = vadd.f32 %v1058, %v1282
        %v1284 = vpop.f32.mrf.mxu0
        %1285 = vmatprep.mubr.f32.mxu0 %v783
        %1286 = vmatmul.mubr.f32.gmra.mxu0 %v782
        %v1287 = vpop.f32.mrf.mxu0
        %v1288 = vadd.f32 %v1063, %v1287
        %v1289 = vpop.f32.mrf.mxu0
        %1290 = vmatprep.mubr.f32.mxu0 %v787
        %1291 = vmatmul.mubr.f32.gmra.mxu0 %v786
        %v1292 = vpop.f32.mrf.mxu0
        %v1293 = vadd.f32 %v1068, %v1292
        %v1294 = vpop.f32.mrf.mxu0
        %1295 = vmatprep.mubr.f32.mxu0 %v791
        %1296 = vmatmul.mubr.f32.gmra.mxu0 %v790
        %v1297 = vpop.f32.mrf.mxu0
        %v1298 = vadd.f32 %v1073, %v1297
        %v1299 = vpop.f32.mrf.mxu0
        %1300 = vmatprep.mubr.f32.mxu0 %v795
        %1301 = vmatmul.mubr.f32.gmra.mxu0 %v794
        %v1302 = vpop.f32.mrf.mxu0
        %v1303 = vadd.f32 %v1078, %v1302
        %v1304 = vpop.f32.mrf.mxu0
        %1305 = vmatprep.mubr.f32.mxu0 %v799
        %1306 = vmatmul.mubr.f32.gmra.mxu0 %v798
        %v1307 = vpop.f32.mrf.mxu0
        %v1308 = vadd.f32 %v1083, %v1307
        %v1309 = vpop.f32.mrf.mxu0
        %1310 = vmatprep.mubr.f32.mxu0 %v803
        %1311 = vmatmul.mubr.f32.gmra.mxu0 %v802
        %v1312 = vpop.f32.mrf.mxu0
        %v1313 = vadd.f32 %v1088, %v1312
        %v1314 = vpop.f32.mrf.mxu0
        %1315 = vmatprep.mubr.f32.mxu0 %v807
        %1316 = vmatmul.mubr.f32.gmra.mxu0 %v806
        %v1317 = vpop.f32.mrf.mxu0
        %v1318 = vadd.f32 %v1093, %v1317
        %v1319 = vpop.f32.mrf.mxu0
        %1320 = vmatprep.mubr.f32.mxu0 %v811
        %1321 = vmatmul.mubr.f32.gmra.mxu0 %v810
        %v1322 = vpop.f32.mrf.mxu0
        %v1323 = vadd.f32 %v1098, %v1322
        %v1324 = vpop.f32.mrf.mxu0
        %1325 = vdwg.mxu0
        %v1326 = vmul.f32 %v1168, %v1168
        %v1327 = vmul.f32 %v1173, %v1173
        %v1328 = vmul.f32 %v1178, %v1178
        %v1329 = vmul.f32 %v1183, %v1183
        %v1330 = vmul.f32 %v1188, %v1188
        %v1331 = vmul.f32 %v1193, %v1193
        %v1332 = vmul.f32 %v1198, %v1198
        %v1333 = vmul.f32 %v1203, %v1203
        %v1334 = vmul.f32 %v1208, %v1208
        %v1335 = vmul.f32 %v1213, %v1213
        %v1336 = vmul.f32 %v1218, %v1218
        %v1337 = vmul.f32 %v1223, %v1223
        %v1338 = vmul.f32 %v1228, %v1228
        %v1339 = vmul.f32 %v1233, %v1233
        %v1340 = vmul.f32 %v1238, %v1238
        %v1341 = vmul.f32 %v1243, %v1243
        %v1342 = vmul.f32 %v1248, %v1248
        %v1343 = vmul.f32 %v1253, %v1253
        %v1344 = vmul.f32 %v1258, %v1258
        %v1345 = vmul.f32 %v1263, %v1263
        %v1346 = vmul.f32 %v1268, %v1268
        %v1347 = vmul.f32 %v1273, %v1273
        %v1348 = vmul.f32 %v1278, %v1278
        %v1349 = vmul.f32 %v1283, %v1283
        %v1350 = vmul.f32 %v1288, %v1288
        %v1351 = vmul.f32 %v1293, %v1293
        %v1352 = vmul.f32 %v1298, %v1298
        %v1353 = vmul.f32 %v1303, %v1303
        %v1354 = vmul.f32 %v1308, %v1308
        %v1355 = vmul.f32 %v1313, %v1313
        %v1356 = vmul.f32 %v1318, %v1318
        %v1357 = vmul.f32 %v1323, %v1323
        %1358 = vadd.xlane.f32.xlu0 %v1326
        %v1359 = vpop.xlane.xlu0 %1358
        %1360 = vadd.xlane.f32.xlu0 %v1327
        %v1361 = vpop.xlane.xlu0 %1360
        %1362 = vadd.xlane.f32.xlu0 %v1328
        %v1363 = vpop.xlane.xlu0 %1362
        %1364 = vadd.xlane.f32.xlu0 %v1329
        %v1365 = vpop.xlane.xlu0 %1364
        %1366 = vadd.xlane.f32.xlu0 %v1330
        %v1367 = vpop.xlane.xlu0 %1366
        %1368 = vadd.xlane.f32.xlu0 %v1331
        %v1369 = vpop.xlane.xlu0 %1368
        %1370 = vadd.xlane.f32.xlu0 %v1332
        %v1371 = vpop.xlane.xlu0 %1370
        %1372 = vadd.xlane.f32.xlu0 %v1333
        %v1373 = vpop.xlane.xlu0 %1372
        %1374 = vadd.xlane.f32.xlu0 %v1334
        %v1375 = vpop.xlane.xlu0 %1374
        %1376 = vadd.xlane.f32.xlu0 %v1335
        %v1377 = vpop.xlane.xlu0 %1376
        %1378 = vadd.xlane.f32.xlu0 %v1336
        %v1379 = vpop.xlane.xlu0 %1378
        %1380 = vadd.xlane.f32.xlu0 %v1337
        %v1381 = vpop.xlane.xlu0 %1380
        %1382 = vadd.xlane.f32.xlu0 %v1338
        %v1383 = vpop.xlane.xlu0 %1382
        %1384 = vadd.xlane.f32.xlu0 %v1339
        %v1385 = vpop.xlane.xlu0 %1384
        %1386 = vadd.xlane.f32.xlu0 %v1340
        %v1387 = vpop.xlane.xlu0 %1386
        %1388 = vadd.xlane.f32.xlu0 %v1341
        %v1389 = vpop.xlane.xlu0 %1388
        %1390 = vadd.xlane.f32.xlu0 %v1342
        %v1391 = vpop.xlane.xlu0 %1390
        %1392 = vadd.xlane.f32.xlu0 %v1343
        %v1393 = vpop.xlane.xlu0 %1392
        %1394 = vadd.xlane.f32.xlu0 %v1344
        %v1395 = vpop.xlane.xlu0 %1394
        %1396 = vadd.xlane.f32.xlu0 %v1345
        %v1397 = vpop.xlane.xlu0 %1396
        %1398 = vadd.xlane.f32.xlu0 %v1346
        %v1399 = vpop.xlane.xlu0 %1398
        %1400 = vadd.xlane.f32.xlu0 %v1347
        %v1401 = vpop.xlane.xlu0 %1400
        %1402 = vadd.xlane.f32.xlu0 %v1348
        %v1403 = vpop.xlane.xlu0 %1402
        %1404 = vadd.xlane.f32.xlu0 %v1349
        %v1405 = vpop.xlane.xlu0 %1404
        %1406 = vadd.xlane.f32.xlu0 %v1350
        %v1407 = vpop.xlane.xlu0 %1406
        %1408 = vadd.xlane.f32.xlu0 %v1351
        %v1409 = vpop.xlane.xlu0 %1408
        %1410 = vadd.xlane.f32.xlu0 %v1352
        %v1411 = vpop.xlane.xlu0 %1410
        %1412 = vadd.xlane.f32.xlu0 %v1353
        %v1413 = vpop.xlane.xlu0 %1412
        %1414 = vadd.xlane.f32.xlu0 %v1354
        %v1415 = vpop.xlane.xlu0 %1414
        %1416 = vadd.xlane.f32.xlu0 %v1355
        %v1417 = vpop.xlane.xlu0 %1416
        %1418 = vadd.xlane.f32.xlu0 %v1356
        %v1419 = vpop.xlane.xlu0 %1418
        %1420 = vadd.xlane.f32.xlu0 %v1357
        %v1421 = vpop.xlane.xlu0 %1420
        %vm1422 = vcmp.gt.f32.partialorder %v1359, 9.0
        %vm1423 = vcmp.gt.f32.partialorder %v1361, 9.0
        %vm1424 = vcmp.gt.f32.partialorder %v1363, 9.0
        %vm1425 = vcmp.gt.f32.partialorder %v1365, 9.0
        %vm1426 = vcmp.gt.f32.partialorder %v1367, 9.0
        %vm1427 = vcmp.gt.f32.partialorder %v1369, 9.0
        %vm1428 = vcmp.gt.f32.partialorder %v1371, 9.0
        %vm1429 = vcmp.gt.f32.partialorder %v1373, 9.0
        %vm1430 = vcmp.gt.f32.partialorder %v1375, 9.0
        %vm1431 = vcmp.gt.f32.partialorder %v1377, 9.0
        %vm1432 = vcmp.gt.f32.partialorder %v1379, 9.0
        %vm1433 = vcmp.gt.f32.partialorder %v1381, 9.0
        %vm1434 = vcmp.gt.f32.partialorder %v1383, 9.0
        %vm1435 = vcmp.gt.f32.partialorder %v1385, 9.0
        %vm1436 = vcmp.gt.f32.partialorder %v1387, 9.0
        %vm1437 = vcmp.gt.f32.partialorder %v1389, 9.0
        %vm1438 = vcmp.gt.f32.partialorder %v1391, 9.0
        %vm1439 = vcmp.gt.f32.partialorder %v1393, 9.0
        %vm1440 = vcmp.gt.f32.partialorder %v1395, 9.0
        %vm1441 = vcmp.gt.f32.partialorder %v1397, 9.0
        %vm1442 = vcmp.gt.f32.partialorder %v1399, 9.0
        %vm1443 = vcmp.gt.f32.partialorder %v1401, 9.0
        %vm1444 = vcmp.gt.f32.partialorder %v1403, 9.0
        %vm1445 = vcmp.gt.f32.partialorder %v1405, 9.0
        %vm1446 = vcmp.gt.f32.partialorder %v1407, 9.0
        %vm1447 = vcmp.gt.f32.partialorder %v1409, 9.0
        %vm1448 = vcmp.gt.f32.partialorder %v1411, 9.0
        %vm1449 = vcmp.gt.f32.partialorder %v1413, 9.0
        %vm1450 = vcmp.gt.f32.partialorder %v1415, 9.0
        %vm1451 = vcmp.gt.f32.partialorder %v1417, 9.0
        %vm1452 = vcmp.gt.f32.partialorder %v1419, 9.0
        %vm1453 = vcmp.gt.f32.partialorder %v1421, 9.0
        %v1454 = vrsqrt.pop %v1359
        %v1455 = vrsqrt.pop %v1361
        %v1456 = vrsqrt.pop %v1363
        %v1457 = vrsqrt.pop %v1365
        %v1458 = vrsqrt.pop %v1367
        %v1459 = vrsqrt.pop %v1369
        %v1460 = vrsqrt.pop %v1371
        %v1461 = vrsqrt.pop %v1373
        %v1462 = vrsqrt.pop %v1375
        %v1463 = vrsqrt.pop %v1377
        %v1464 = vrsqrt.pop %v1379
        %v1465 = vrsqrt.pop %v1381
        %v1466 = vrsqrt.pop %v1383
        %v1467 = vrsqrt.pop %v1385
        %v1468 = vrsqrt.pop %v1387
        %v1469 = vrsqrt.pop %v1389
        %v1470 = vrsqrt.pop %v1391
        %v1471 = vrsqrt.pop %v1393
        %v1472 = vrsqrt.pop %v1395
        %v1473 = vrsqrt.pop %v1397
        %v1474 = vrsqrt.pop %v1399
        %v1475 = vrsqrt.pop %v1401
        %v1476 = vrsqrt.pop %v1403
        %v1477 = vrsqrt.pop %v1405
        %v1478 = vrsqrt.pop %v1407
        %v1479 = vrsqrt.pop %v1409
        %v1480 = vrsqrt.pop %v1411
        %v1481 = vrsqrt.pop %v1413
        %v1482 = vrsqrt.pop %v1415
        %v1483 = vrsqrt.pop %v1417
        %v1484 = vrsqrt.pop %v1419
        %v1485 = vrsqrt.pop %v1421
        %v1486 = vmul.f32 %v1454, 3.0
        %v1487 = vmul.f32 %v1455, 3.0
        %v1488 = vmul.f32 %v1456, 3.0
        %v1489 = vmul.f32 %v1457, 3.0
        %v1490 = vmul.f32 %v1458, 3.0
        %v1491 = vmul.f32 %v1459, 3.0
        %v1492 = vmul.f32 %v1460, 3.0
        %v1493 = vmul.f32 %v1461, 3.0
        %v1494 = vmul.f32 %v1462, 3.0
        %v1495 = vmul.f32 %v1463, 3.0
        %v1496 = vmul.f32 %v1464, 3.0
        %v1497 = vmul.f32 %v1465, 3.0
        %v1498 = vmul.f32 %v1466, 3.0
        %v1499 = vmul.f32 %v1467, 3.0
        %v1500 = vmul.f32 %v1468, 3.0
        %v1501 = vmul.f32 %v1469, 3.0
        %v1502 = vmul.f32 %v1470, 3.0
        %v1503 = vmul.f32 %v1471, 3.0
        %v1504 = vmul.f32 %v1472, 3.0
        %v1505 = vmul.f32 %v1473, 3.0
        %v1506 = vmul.f32 %v1474, 3.0
        %v1507 = vmul.f32 %v1475, 3.0
        %v1508 = vmul.f32 %v1476, 3.0
        %v1509 = vmul.f32 %v1477, 3.0
        %v1510 = vmul.f32 %v1478, 3.0
        %v1511 = vmul.f32 %v1479, 3.0
        %v1512 = vmul.f32 %v1480, 3.0
        %v1513 = vmul.f32 %v1481, 3.0
        %v1514 = vmul.f32 %v1482, 3.0
        %v1515 = vmul.f32 %v1483, 3.0
        %v1516 = vmul.f32 %v1484, 3.0
        %v1517 = vmul.f32 %v1485, 3.0
        %v1518 = vsel %vm1422, %v1486, 1.0
        %v1519 = vsel %vm1423, %v1487, 1.0
        %v1520 = vsel %vm1424, %v1488, 1.0
        %v1521 = vsel %vm1425, %v1489, 1.0
        %v1522 = vsel %vm1426, %v1490, 1.0
        %v1523 = vsel %vm1427, %v1491, 1.0
        %v1524 = vsel %vm1428, %v1492, 1.0
        %v1525 = vsel %vm1429, %v1493, 1.0
        %v1526 = vsel %vm1430, %v1494, 1.0
        %v1527 = vsel %vm1431, %v1495, 1.0
        %v1528 = vsel %vm1432, %v1496, 1.0
        %v1529 = vsel %vm1433, %v1497, 1.0
        %v1530 = vsel %vm1434, %v1498, 1.0
        %v1531 = vsel %vm1435, %v1499, 1.0
        %v1532 = vsel %vm1436, %v1500, 1.0
        %v1533 = vsel %vm1437, %v1501, 1.0
        %v1534 = vsel %vm1438, %v1502, 1.0
        %v1535 = vsel %vm1439, %v1503, 1.0
        %v1536 = vsel %vm1440, %v1504, 1.0
        %v1537 = vsel %vm1441, %v1505, 1.0
        %v1538 = vsel %vm1442, %v1506, 1.0
        %v1539 = vsel %vm1443, %v1507, 1.0
        %v1540 = vsel %vm1444, %v1508, 1.0
        %v1541 = vsel %vm1445, %v1509, 1.0
        %v1542 = vsel %vm1446, %v1510, 1.0
        %v1543 = vsel %vm1447, %v1511, 1.0
        %v1544 = vsel %vm1448, %v1512, 1.0
        %v1545 = vsel %vm1449, %v1513, 1.0
        %v1546 = vsel %vm1450, %v1514, 1.0
        %v1547 = vsel %vm1451, %v1515, 1.0
        %v1548 = vsel %vm1452, %v1516, 1.0
        %v1549 = vsel %vm1453, %v1517, 1.0
        %v1550 = vmul.f32 %v1168, %v1518
        %v1551 = vmul.f32 %v1173, %v1519
        %v1552 = vmul.f32 %v1178, %v1520
        %v1553 = vmul.f32 %v1183, %v1521
        %v1554 = vmul.f32 %v1188, %v1522
        %v1555 = vmul.f32 %v1193, %v1523
        %v1556 = vmul.f32 %v1198, %v1524
        %v1557 = vmul.f32 %v1203, %v1525
        %v1558 = vmul.f32 %v1208, %v1526
        %v1559 = vmul.f32 %v1213, %v1527
        %v1560 = vmul.f32 %v1218, %v1528
        %v1561 = vmul.f32 %v1223, %v1529
        %v1562 = vmul.f32 %v1228, %v1530
        %v1563 = vmul.f32 %v1233, %v1531
        %v1564 = vmul.f32 %v1238, %v1532
        %v1565 = vmul.f32 %v1243, %v1533
        %v1566 = vmul.f32 %v1248, %v1534
        %v1567 = vmul.f32 %v1253, %v1535
        %v1568 = vmul.f32 %v1258, %v1536
        %v1569 = vmul.f32 %v1263, %v1537
        %v1570 = vmul.f32 %v1268, %v1538
        %v1571 = vmul.f32 %v1273, %v1539
        %v1572 = vmul.f32 %v1278, %v1540
        %v1573 = vmul.f32 %v1283, %v1541
        %v1574 = vmul.f32 %v1288, %v1542
        %v1575 = vmul.f32 %v1293, %v1543
        %v1576 = vmul.f32 %v1298, %v1544
        %v1577 = vmul.f32 %v1303, %v1545
        %v1578 = vmul.f32 %v1308, %v1546
        %v1579 = vmul.f32 %v1313, %v1547
        %v1580 = vmul.f32 %v1318, %v1548
        %v1581 = vmul.f32 %v1323, %v1549
        %1582 = vst [vmem:[%s111] sm:$0xff] %v1550
        %1583 = vst [vmem:[%s111 + $0x8] sm:$0xff] %v1551
        %1584 = vst [vmem:[%s111 + $0x10] sm:$0xff] %v1552
        %1585 = vst [vmem:[%s111 + $0x18] sm:$0xff] %v1553
        %1586 = vst [vmem:[%s111 + $0x20] sm:$0xff] %v1554
        %1587 = vst [vmem:[%s111 + $0x28] sm:$0xff] %v1555
        %1588 = vst [vmem:[%s111 + $0x30] sm:$0xff] %v1556
        %1589 = vst [vmem:[%s111 + $0x38] sm:$0xff] %v1557
        %1590 = vst [vmem:[%s111 + $0x40] sm:$0xff] %v1558
        %1591 = vst [vmem:[%s111 + $0x48] sm:$0xff] %v1559
        %1592 = vst [vmem:[%s111 + $0x50] sm:$0xff] %v1560
        %1593 = vst [vmem:[%s111 + $0x58] sm:$0xff] %v1561
        %1594 = vst [vmem:[%s111 + $0x60] sm:$0xff] %v1562
        %1595 = vst [vmem:[%s111 + $0x68] sm:$0xff] %v1563
        %1596 = vst [vmem:[%s111 + $0x70] sm:$0xff] %v1564
        %1597 = vst [vmem:[%s111 + $0x78] sm:$0xff] %v1565
        %1598 = vst [vmem:[%s111 + $0x80] sm:$0xff] %v1566
        %1599 = vst [vmem:[%s111 + $0x88] sm:$0xff] %v1567
        %1600 = vst [vmem:[%s111 + $0x90] sm:$0xff] %v1568
        %1601 = vst [vmem:[%s111 + $0x98] sm:$0xff] %v1569
        %1602 = vst [vmem:[%s111 + $0xa0] sm:$0xff] %v1570
        %1603 = vst [vmem:[%s111 + $0xa8] sm:$0xff] %v1571
        %1604 = vst [vmem:[%s111 + $0xb0] sm:$0xff] %v1572
        %1605 = vst [vmem:[%s111 + $0xb8] sm:$0xff] %v1573
        %1606 = vst [vmem:[%s111 + $0xc0] sm:$0xff] %v1574
        %1607 = vst [vmem:[%s111 + $0xc8] sm:$0xff] %v1575
        %1608 = vst [vmem:[%s111 + $0xd0] sm:$0xff] %v1576
        %1609 = vst [vmem:[%s111 + $0xd8] sm:$0xff] %v1577
        %1610 = vst [vmem:[%s111 + $0xe0] sm:$0xff] %v1578
        %1611 = vst [vmem:[%s111 + $0xe8] sm:$0xff] %v1579
        %1612 = vst [vmem:[%s111 + $0xf0] sm:$0xff] %v1580
        %1613 = vst [vmem:[%s111 + $0xf8] sm:$0xff] %v1581
        %s1614 = sand.u32 %s50, 1
        %s1615 = scalar_lea.sflag [#allocation5], %s1614
        %s1616 = sand.u32 %s50, 1
        %s1617 = smul.addr %s1616, 256
        %s1618 = scalar_lea.vmem [#allocation4], %s1617
        // Predicated region
        $region63: #{tpu_custom_call.1} parent=23 // pred_check
          %p1619 = pneg %p60
        $region64: #{tpu_custom_call.1} parent=23 // pred_check_branch
          %1621 = sbr.rel (%p1619) target = $region66
        $region65: #{tpu_custom_call.1} parent=23 // pred_region
          %s1622 = smul.u32 32, %s16
          %s1624 = ssub.s32 4096, 4096
          %1625 = vsyncadd %s1615, %s1624
          %s1626 = smul.addr %s1622, 128
          %s1627 = scalar_lea.hbm %s2, %s1626
          %s1628 = sshll.u32 %s1618, 4
          %s1629 = int_to_ptr.vmem [resolvable:$true] %s1628
          %1634 = dma.vmem_to_hbm [thread:$0]  %s1629, 4096, %s1627, %s1615, 128, 128, 8
        $region66: #{tpu_custom_call.1} parent=23 // pred_fallthru
          _
      $region24: #{tpu_custom_call.1} parent=5 // pred_fallthru
        _
      %p1635 = scmp.le.s32.totalorder 2, %s11
      // Predicated region
      $region67: #{tpu_custom_call.1} parent=5 // pred_check
        %p1636 = pneg %p1635
      $region68: #{tpu_custom_call.1} parent=5 // pred_check_branch
        %1638 = sbr.rel (%p1636) target = $region70
      $region69: #{tpu_custom_call.1} parent=5 // pred_region
        %s1639 = ssub.s32 %s11, 2
        // Predicated region
        $region71: #{tpu_custom_call.1} parent=69 // pred_check
          %p1640 = pneg %p66
        $region72: #{tpu_custom_call.1} parent=69 // pred_check_branch
          %1642 = sbr.rel (%p1640) target = $region74
        $region73: #{tpu_custom_call.1} parent=69 // pred_region
          %s1643 = sand.u32 %s51, 1
          %s1644 = scalar_lea.sflag [#allocation5], %s1643
          %s1645 = sand.u32 %s51, 1
          %s1646 = smul.addr %s1645, 256
          %s1647 = scalar_lea.vmem [#allocation4], %s1646
          %1648 = dma.done %s1644, 4096
        $region74: #{tpu_custom_call.1} parent=69 // pred_fallthru
          _
      $region70: #{tpu_custom_call.1} parent=5 // pred_fallthru
        _
    $region6: #{tpu_custom_call.1} parent=1 // loop_footer
      %s15 = sadd.s32 1, %s11
    $region7: #{tpu_custom_call.1} parent=1 // loop_footer_branch
      %10 = sbr.rel target = $region3
    $region8: #{tpu_custom_call.1} parent=1 // loop_exit
      _
    %1649 = vsyncpa [#allocation5], 1
    %s1650 = scalar_lea.sflag [#allocation5], 1
    %1651 = vsyncpa %s1650, 1
  %1652 = vsyncmov [#allocation3]
  %s1653 = vpop.sfrf %1652
  %p1654 = scmp.eq.s32.totalorder %s1653, 0
  %p1655 = pneg %p1654
  %1657 = shalt.err (%p1655)

</llo_original>
